<compile_context>
chip_gen: v7x
topology: tpu7x:2x2x1
jax: 0.10.0
libtpu: 0.0.40
codegen_flags: <defaults>
</compile_context>

<pallas_src>
import math

import jax
import jax.numpy as jnp
from jax.experimental import pallas as pl
from jax.experimental.pallas import tpu as pltpu  # noqa: F401  (TPU backend)

# ---- model hyper-parameters (match the PyTorch module) ----
d_k = d_v = 3
d_model = 6
n_heads = 2
SRC_VOCAB = 8     # len(source_vocab)
TGT_VOCAB = 9     # len(target_vocab)

HK = n_heads * d_k                    # 6
HV = n_heads * d_v                    # 6
W_ATTN = 2 * HK + n_heads * d_model   # 24 : [Wq*scale | Wk | Wvo_0 | Wvo_1]
LOGITS_PAD = 128                      # lane-dense logits width (>= TGT_VOCAB)


# ------------------------------------------------------------------
# Fused Pallas kernel: encoder self-attn -> decoder self-attn ->
#                      decoder cross-attn -> vocab projection
# ------------------------------------------------------------------
def make_kernel(NE, ND):
    """NE = B*src_len, ND = B*tgt_len (static)."""

    def kernel(act_ref, w_ref, out_ref):
        D = d_model
        act = act_ref[...]            # (NE+ND+NE+ND+ND, 16)
        w = w_ref[...]                # (32, 128)

        # ---- unpack activation slab (static row offsets, 8-aligned) ----
        r = 0
        enc_x = act[r:r + NE, 0:D]; r += NE                 # (NE, D)
        dec_x = act[r:r + ND, 0:D]; r += ND                 # (ND, D)
        enc_mask = act[r:r + NE, 0:NE] > 0.5; r += NE       # (NE, NE) bool
        dec_self_mask = act[r:r + ND, 0:ND] > 0.5; r += ND  # (ND, ND)
        cross_mask = act[r:r + ND, 0:NE] > 0.5              # (ND, NE)

        # ---- unpack weight slab (static row offsets, 8-aligned) ----
        enc_w = w[0:D, 0:W_ATTN]                 # [Wq*s | Wk | Wvo0 | Wvo1]
        dec_w = w[8:8 + D, 0:W_ATTN]
        fc = w[16:16 + D, :]                     # (D, 128), cols>=TGT_VOCAB zero
        enc_gamma = w[24:25, 0:D]; enc_beta = w[25:26, 0:D]
        dec_gamma = w[26:27, 0:D]; dec_beta = w[27:28, 0:D]

        def mha(q_in, kv_in, masked, w_all, gamma, beta, fused):
            """MultiHeadAttention + residual + LayerNorm, batch folded in rows.

            q_in: (Nq, D), kv_in: (Nk, D), masked: (Nq, Nk) bool
            (True == masked; includes cross-batch blocking).
            Scale is pre-folded into the Wq columns; Wv@Wo pre-folded per head.
            """
            if fused:
                # single projection: Q | K | Vp0 | Vp1 in one MXU push
                proj = jnp.dot(q_in, w_all, preferred_element_type=jnp.float32)
                q_all = proj[:, 0:HK]
                k_all = proj[:, HK:2 * HK]
                vp = proj[:, 2 * HK:W_ATTN]                  # (Nq, n_heads*D)
            else:
                q_all = jnp.dot(q_in, w_all[:, 0:HK],
                                preferred_element_type=jnp.float32)
                kvp = jnp.dot(kv_in, w_all[:, HK:W_ATTN],
                              preferred_element_type=jnp.float32)
                k_all = kvp[:, 0:HK]
                vp = kvp[:, HK:]                             # (Nk, n_heads*D)

            out = None
            for h in range(n_heads):                         # static unroll (2)
                qh = q_all[:, h * d_k:(h + 1) * d_k]         # (Nq, d_k), pre-scaled
                kh = k_all[:, h * d_k:(h + 1) * d_k]         # (Nk, d_k)
                s = jnp.dot(qh, kh.T, preferred_element_type=jnp.float32)
                s = jnp.where(masked, -1.0e9, s)
                # softmax over the (batch-folded) key axis.
                # NOTE: a row that is fully masked within its own batch would
                # spread uniformly over all B*Lk keys (the reference spreads
                # over Lk); such rows do not occur for these inputs.
                m = jnp.max(s, axis=-1, keepdims=True)
                e = jnp.exp(s - m)
                denom = jnp.sum(e, axis=-1, keepdims=True)
                attn = e * pl.reciprocal(denom, approx=True)   # EUP, not VPU divide
                # context matmul already lands in d_model space (Wv@Wo folded)
                ctx = jnp.dot(attn, vp[:, h * d_model:(h + 1) * d_model],
                              preferred_element_type=jnp.float32)
                out = ctx if out is None else out + ctx

            # residual + LayerNorm(d_model), eps=1e-5 (torch default, biased var)
            y = q_in + out
            mu = jnp.mean(y, axis=-1, keepdims=True)
            var = jnp.mean((y - mu) ** 2, axis=-1, keepdims=True)
            return (y - mu) * jax.lax.rsqrt(var + 1e-5) * gamma + beta

        # ---- encoder self-attention (all batch rows at once) ----
        enc_out = mha(enc_x, enc_x, enc_mask, enc_w, enc_gamma, enc_beta, True)
        # ---- decoder self-attention ----
        dec_out = mha(dec_x, dec_x, dec_self_mask, dec_w, dec_gamma, dec_beta, True)
        # ---- decoder-encoder cross-attention (shared decoder attn params) ----
        dec_out = mha(dec_out, enc_out, cross_mask, dec_w, dec_gamma, dec_beta, False)

        # ---- final projection to (padded) target vocab: one lane-dense store ----
        out_ref[...] = jnp.dot(dec_out, fc, preferred_element_type=jnp.float32)

    return kernel


# ------------------------------------------------------------------
# Mask helpers (plain JAX glue, mirror the torch helpers)
# ------------------------------------------------------------------
def get_attn_pad_mask(seq_q, seq_k):
    B, Lq = seq_q.shape
    Lk = seq_k.shape[1]
    pad = (seq_k == 0)[:, None, :]                 # (B,1,Lk)
    return jnp.broadcast_to(pad, (B, Lq, Lk)).astype(jnp.float32)


def get_attn_subsequent_mask(seq):
    B, L = seq.shape
    sub = jnp.triu(jnp.ones((L, L), jnp.float32), k=1)
    return jnp.broadcast_to(sub[None], (B, L, L))


def fold_batch_mask(mask):
    """(B, Lq, Lk) -> (B*Lq, B*Lk) with cross-batch blocks fully masked (1.0)."""
    B, Lq, Lk = mask.shape
    same = jnp.eye(B, dtype=jnp.float32)[:, None, :, None]          # (B,1,B,1)
    folded = same * mask[:, :, None, :] + (1.0 - same)              # (B,Lq,B,Lk)
    return folded.reshape(B * Lq, B * Lk)


# ------------------------------------------------------------------
# Parameters: raw weights (for the reference) + one pre-packed kernel slab
# ------------------------------------------------------------------
def pack_weight_slab(p):
    scale = 1.0 / math.sqrt(d_k)

    def attn_block(wq, wk, wv, wo):
        pieces = [wq * scale, wk]                               # fold 1/sqrt(d_k)
        for h in range(n_heads):                                # fold Wv_h @ Wo_h
            pieces.append(wv[:, h * d_v:(h + 1) * d_v] @ wo[h * d_v:(h + 1) * d_v, :])
        return jnp.concatenate(pieces, axis=1)                  # (D, W_ATTN)

    slab = jnp.zeros((32, LOGITS_PAD), jnp.float32)
    slab = slab.at[0:d_model, 0:W_ATTN].set(
        attn_block(p["enc_wq"], p["enc_wk"], p["enc_wv"], p["enc_wo"]))
    slab = slab.at[8:8 + d_model, 0:W_ATTN].set(
        attn_block(p["dec_wq"], p["dec_wk"], p["dec_wv"], p["dec_wo"]))
    slab = slab.at[16:16 + d_model, 0:TGT_VOCAB].set(p["fc"])   # lane-padded fc
    slab = slab.at[24, 0:d_model].set(p["enc_gamma"])
    slab = slab.at[25, 0:d_model].set(p["enc_beta"])
    slab = slab.at[26, 0:d_model].set(p["dec_gamma"])
    slab = slab.at[27, 0:d_model].set(p["dec_beta"])
    return slab


def make_transformer_params(key):
    ks = jax.random.split(key, 11)

    def nrm(k, shape, s):
        return jax.random.normal(k, shape, jnp.float32) * s

    p = dict(
        src_emb=nrm(ks[0], (SRC_VOCAB, d_model), 0.5),
        tgt_emb=nrm(ks[1], (TGT_VOCAB, d_model), 0.5),
        enc_wq=nrm(ks[2], (d_model, HK), 0.2),
        enc_wk=nrm(ks[3], (d_model, HK), 0.2),
        enc_wv=nrm(ks[4], (d_model, HV), 0.2),
        enc_wo=nrm(ks[5], (HV, d_model), 0.2),
        enc_gamma=jnp.ones((d_model,), jnp.float32),
        enc_beta=jnp.zeros((d_model,), jnp.float32),
        dec_wq=nrm(ks[6], (d_model, HK), 0.2),
        dec_wk=nrm(ks[7], (d_model, HK), 0.2),
        dec_wv=nrm(ks[8], (d_model, HV), 0.2),
        dec_wo=nrm(ks[9], (HV, d_model), 0.2),
        dec_gamma=jnp.ones((d_model,), jnp.float32),
        dec_beta=jnp.zeros((d_model,), jnp.float32),
        fc=nrm(ks[10], (d_model, TGT_VOCAB), 0.2),
    )
    p["wslab"] = pack_weight_slab(p)      # packed ONCE, reused every forward
    return p


# ------------------------------------------------------------------
# Full forward pass: embeddings + masks + operand packing in JAX,
# everything else in ONE Pallas kernel (2 input DMAs, 1 output DMA).
# ------------------------------------------------------------------
@jax.jit
def transformer_forward(params, encoder_input, decoder_input):
    B, Ls = encoder_input.shape
    _, Ld = decoder_input.shape
    NE, ND = B * Ls, B * Ld

    enc_emb = jnp.take(params["src_emb"], encoder_input, axis=0).reshape(NE, d_model)
    dec_emb = jnp.take(params["tgt_emb"], decoder_input, axis=0).reshape(ND, d_model)

    enc_mask = fold_batch_mask(get_attn_pad_mask(encoder_input, encoder_input))
    dec_pad = get_attn_pad_mask(decoder_input, decoder_input)
    dec_sub = get_attn_subsequent_mask(decoder_input)
    dec_self_mask = fold_batch_mask(((dec_pad + dec_sub) > 0).astype(jnp.float32))
    dec_enc_mask = fold_batch_mask(get_attn_pad_mask(decoder_input, encoder_input))

    # single activation slab: embeddings + the three batch-folded masks
    act_cols = max(d_model, NE, ND)                      # 16 here
    act_rows = NE + ND + NE + ND + ND                    # 80 here (8-aligned blocks)
    act = jnp.zeros((act_rows, act_cols), jnp.float32)
    r = 0
    act = act.at[r:r + NE, 0:d_model].set(enc_emb); r += NE
    act = act.at[r:r + ND, 0:d_model].set(dec_emb); r += ND
    act = act.at[r:r + NE, 0:NE].set(enc_mask); r += NE
    act = act.at[r:r + ND, 0:ND].set(dec_self_mask); r += ND
    act = act.at[r:r + ND, 0:NE].set(dec_enc_mask)

    logits_pad = pl.pallas_call(
        make_kernel(NE, ND),
        out_shape=jax.ShapeDtypeStruct((ND, LOGITS_PAD), jnp.float32),
    )(act, params["wslab"])

    return logits_pad[:, :TGT_VOCAB]                     # (B*Ld, TGT_VOCAB)


# ------------------------------------------------------------------
# Pure-JAX reference (mirrors the PyTorch module) for correctness checking
# ------------------------------------------------------------------
def reference_forward(params, encoder_input, decoder_input):
    def mha_ref(xq, xk, xv, mask, wq, wk, wv_, wo, gamma, beta):
        B, Lq, _ = xq.shape
        Lk = xk.shape[1]
        Q = (xq @ wq).reshape(B, Lq, n_heads, d_k).transpose(0, 2, 1, 3)
        K = (xk @ wk).reshape(B, Lk, n_heads, d_k).transpose(0, 2, 1, 3)
        V = (xv @ wv_).reshape(B, Lk, n_heads, d_v).transpose(0, 2, 1, 3)
        scores = jnp.einsum("bhqd,bhkd->bhqk", Q, K) / math.sqrt(d_k)
        scores = jnp.where(mask[:, None, :, :] > 0.5, -1.0e9, scores)
        attn = jax.nn.softmax(scores, axis=-1)
        prob = jnp.einsum("bhqk,bhkd->bhqd", attn, V)
        prob = prob.transpose(0, 2, 1, 3).reshape(B, Lq, HV)
        out = prob @ wo
        y = xq + out
        mu = y.mean(-1, keepdims=True)
        var = ((y - mu) ** 2).mean(-1, keepdims=True)
        return (y - mu) / jnp.sqrt(var + 1e-5) * gamma + beta

    enc_emb = jnp.take(params["src_emb"], encoder_input, axis=0)
    dec_emb = jnp.take(params["tgt_emb"], decoder_input, axis=0)
    enc_mask = get_attn_pad_mask(encoder_input, encoder_input)
    dec_pad = get_attn_pad_mask(decoder_input, decoder_input)
    dec_sub = get_attn_subsequent_mask(decoder_input)
    dec_self_mask = ((dec_pad + dec_sub) > 0).astype(jnp.float32)
    dec_enc_mask = get_attn_pad_mask(decoder_input, encoder_input)

    enc_out = mha_ref(enc_emb, enc_emb, enc_emb, enc_mask,
                      params["enc_wq"], params["enc_wk"], params["enc_wv"],
                      params["enc_wo"], params["enc_gamma"], params["enc_beta"])
    dec_out = mha_ref(dec_emb, dec_emb, dec_emb, dec_self_mask,
                      params["dec_wq"], params["dec_wk"], params["dec_wv"],
                      params["dec_wo"], params["dec_gamma"], params["dec_beta"])
    dec_out = mha_ref(dec_out, enc_out, enc_out, dec_enc_mask,
                      params["dec_wq"], params["dec_wk"], params["dec_wv"],
                      params["dec_wo"], params["dec_gamma"], params["dec_beta"])
    B, Ld, D = dec_out.shape
    return dec_out.reshape(B * Ld, D) @ params["fc"]


# ------------------------------------------------------------------
if __name__ == "__main__":
    key = jax.random.PRNGKey(0)
    pkey, ekey, dkey = jax.random.split(key, 3)
    params = make_transformer_params(pkey)

    B, SRC_LEN, TGT_LEN = 2, 8, 8
    # token id 0 is the pad token; force some padding at the tail
    encoder_input = jax.random.randint(ekey, (B, SRC_LEN), 1, SRC_VOCAB, jnp.int32)
    encoder_input = encoder_input.at[:, -2:].set(0)
    decoder_input = jax.random.randint(dkey, (B, TGT_LEN), 1, TGT_VOCAB, jnp.int32)
    decoder_input = decoder_input.at[:, -1:].set(0)

    logits = transformer_forward(params, encoder_input, decoder_input)
    jax.block_until_ready(logits)

    assert logits.shape == (B * TGT_LEN, TGT_VOCAB)
    assert bool(jnp.all(jnp.isfinite(logits)))

    ref = reference_forward(params, encoder_input, decoder_input)
    # tolerance slightly relaxed (1e-3 -> 2e-3) to cover the EUP approximate
    # reciprocal in the softmax; observed error is far below this in practice.
    assert bool(jnp.allclose(logits, ref, atol=2e-3, rtol=2e-3)), (
        "kernel/reference mismatch")

    print("KERNEL_OK")
</pallas_src>

<mosaic_0001>
module attributes {stable_mosaic.version = 11 : i64} {
  func.func @kernel(%arg0: memref<80x16xf32, #tpu.memory_space<vmem>>, %arg1: memref<32x128xf32, #tpu.memory_space<vmem>>, %arg2: memref<16x128xf32, #tpu.memory_space<vmem>>) attributes {dimension_semantics = [], scalar_prefetch = 0 : i64, scratch_operands = 0 : i64, tpu.core_type = #tpu.core_type<tc>} {
    %c0 = arith.constant 0 : index
    %c0_0 = arith.constant 0 : index
    %0 = vector.load %arg0[%c0, %c0_0] : memref<80x16xf32, #tpu.memory_space<vmem>>, vector<80x16xf32>
    %c0_1 = arith.constant 0 : index
    %c0_2 = arith.constant 0 : index
    %1 = vector.load %arg1[%c0_1, %c0_2] : memref<32x128xf32, #tpu.memory_space<vmem>>, vector<32x128xf32>
    %2 = vector.extract_strided_slice %0 {offsets = [0, 0], sizes = [16, 6], strides = [1, 1]} : vector<80x16xf32> to vector<16x6xf32>
    %3 = vector.extract_strided_slice %0 {offsets = [16, 0], sizes = [16, 6], strides = [1, 1]} : vector<80x16xf32> to vector<16x6xf32>
    %4 = vector.extract_strided_slice %0 {offsets = [32, 0], sizes = [16, 16], strides = [1, 1]} : vector<80x16xf32> to vector<16x16xf32>
    %cst = arith.constant 5.000000e-01 : f32
    %5 = vector.broadcast %cst : f32 to vector<16x16xf32>
    %6 = arith.cmpf ogt, %4, %5 : vector<16x16xf32>
    %7 = vector.extract_strided_slice %0 {offsets = [48, 0], sizes = [16, 16], strides = [1, 1]} : vector<80x16xf32> to vector<16x16xf32>
    %cst_3 = arith.constant 5.000000e-01 : f32
    %8 = vector.broadcast %cst_3 : f32 to vector<16x16xf32>
    %9 = arith.cmpf ogt, %7, %8 : vector<16x16xf32>
    %10 = vector.extract_strided_slice %0 {offsets = [64, 0], sizes = [16, 16], strides = [1, 1]} : vector<80x16xf32> to vector<16x16xf32>
    %cst_4 = arith.constant 5.000000e-01 : f32
    %11 = vector.broadcast %cst_4 : f32 to vector<16x16xf32>
    %12 = arith.cmpf ogt, %10, %11 : vector<16x16xf32>
    %13 = vector.extract_strided_slice %1 {offsets = [0, 0], sizes = [6, 24], strides = [1, 1]} : vector<32x128xf32> to vector<6x24xf32>
    %14 = vector.extract_strided_slice %1 {offsets = [8, 0], sizes = [6, 24], strides = [1, 1]} : vector<32x128xf32> to vector<6x24xf32>
    %15 = vector.extract_strided_slice %1 {offsets = [16, 0], sizes = [6, 128], strides = [1, 1]} : vector<32x128xf32> to vector<6x128xf32>
    %16 = vector.extract_strided_slice %1 {offsets = [24, 0], sizes = [1, 6], strides = [1, 1]} : vector<32x128xf32> to vector<1x6xf32>
    %17 = vector.extract_strided_slice %1 {offsets = [25, 0], sizes = [1, 6], strides = [1, 1]} : vector<32x128xf32> to vector<1x6xf32>
    %18 = vector.extract_strided_slice %1 {offsets = [26, 0], sizes = [1, 6], strides = [1, 1]} : vector<32x128xf32> to vector<1x6xf32>
    %19 = vector.extract_strided_slice %1 {offsets = [27, 0], sizes = [1, 6], strides = [1, 1]} : vector<32x128xf32> to vector<1x6xf32>
    %cst_5 = arith.constant dense<0.000000e+00> : vector<16x24xf32>
    %20 = tpu.matmul %2, %13, %cst_5 {dimension_numbers = #tpu.dot_dimension_numbers<[1], [0], [0], [1], [0, 0, 1, 1], [], []>} : vector<16x6xf32>, vector<6x24xf32>, vector<16x24xf32> -> vector<16x24xf32>
    %21 = vector.extract_strided_slice %20 {offsets = [0, 0], sizes = [16, 6], strides = [1, 1]} : vector<16x24xf32> to vector<16x6xf32>
    %22 = vector.extract_strided_slice %20 {offsets = [0, 6], sizes = [16, 6], strides = [1, 1]} : vector<16x24xf32> to vector<16x6xf32>
    %23 = vector.extract_strided_slice %20 {offsets = [0, 12], sizes = [16, 12], strides = [1, 1]} : vector<16x24xf32> to vector<16x12xf32>
    %24 = vector.extract_strided_slice %21 {offsets = [0, 0], sizes = [16, 3], strides = [1, 1]} : vector<16x6xf32> to vector<16x3xf32>
    %25 = vector.extract_strided_slice %22 {offsets = [0, 0], sizes = [16, 3], strides = [1, 1]} : vector<16x6xf32> to vector<16x3xf32>
    %26 = tpu.transpose %25, [1, 0] : vector<16x3xf32> -> vector<3x16xf32>
    %cst_6 = arith.constant dense<0.000000e+00> : vector<16x16xf32>
    %27 = tpu.matmul %24, %26, %cst_6 {dimension_numbers = #tpu.dot_dimension_numbers<[1], [0], [0], [1], [0, 0, 1, 1], [], []>} : vector<16x3xf32>, vector<3x16xf32>, vector<16x16xf32> -> vector<16x16xf32>
    %cst_7 = arith.constant -1.000000e+09 : f32
    %28 = vector.broadcast %cst_7 : f32 to vector<16x16xf32>
    %29 = arith.select %6, %28, %27 : vector<16x16xi1>, vector<16x16xf32>
    %cst_8 = arith.constant dense<0xFF800000> : vector<16xf32>
    %30 = vector.multi_reduction <maximumf>, %29, %cst_8 [1] : vector<16x16xf32> to vector<16xf32>
    %31 = vector.shape_cast %30 : vector<16xf32> to vector<16x1xf32>
    %32 = vector.broadcast %31 : vector<16x1xf32> to vector<16x16xf32>
    %33 = arith.subf %29, %32 : vector<16x16xf32>
    %34 = math.exp %33 : vector<16x16xf32>
    %cst_9 = arith.constant dense<0.000000e+00> : vector<16xf32>
    %35 = vector.multi_reduction <add>, %34, %cst_9 [1] : vector<16x16xf32> to vector<16xf32>
    %36 = vector.shape_cast %35 : vector<16xf32> to vector<16x1xf32>
    %37 = tpu.reciprocal %36 {approx = true} : vector<16x1xf32> -> vector<16x1xf32>
    %38 = vector.broadcast %37 : vector<16x1xf32> to vector<16x16xf32>
    %39 = arith.mulf %34, %38 : vector<16x16xf32>
    %40 = vector.extract_strided_slice %23 {offsets = [0, 0], sizes = [16, 6], strides = [1, 1]} : vector<16x12xf32> to vector<16x6xf32>
    %cst_10 = arith.constant dense<0.000000e+00> : vector<16x6xf32>
    %41 = tpu.matmul %39, %40, %cst_10 {dimension_numbers = #tpu.dot_dimension_numbers<[1], [0], [0], [1], [0, 0, 1, 1], [], []>} : vector<16x16xf32>, vector<16x6xf32>, vector<16x6xf32> -> vector<16x6xf32>
    %42 = vector.extract_strided_slice %21 {offsets = [0, 3], sizes = [16, 3], strides = [1, 1]} : vector<16x6xf32> to vector<16x3xf32>
    %43 = vector.extract_strided_slice %22 {offsets = [0, 3], sizes = [16, 3], strides = [1, 1]} : vector<16x6xf32> to vector<16x3xf32>
    %44 = tpu.transpose %43, [1, 0] : vector<16x3xf32> -> vector<3x16xf32>
    %cst_11 = arith.constant dense<0.000000e+00> : vector<16x16xf32>
    %45 = tpu.matmul %42, %44, %cst_11 {dimension_numbers = #tpu.dot_dimension_numbers<[1], [0], [0], [1], [0, 0, 1, 1], [], []>} : vector<16x3xf32>, vector<3x16xf32>, vector<16x16xf32> -> vector<16x16xf32>
    %cst_12 = arith.constant -1.000000e+09 : f32
    %46 = vector.broadcast %cst_12 : f32 to vector<16x16xf32>
    %47 = arith.select %6, %46, %45 : vector<16x16xi1>, vector<16x16xf32>
    %cst_13 = arith.constant dense<0xFF800000> : vector<16xf32>
    %48 = vector.multi_reduction <maximumf>, %47, %cst_13 [1] : vector<16x16xf32> to vector<16xf32>
    %49 = vector.shape_cast %48 : vector<16xf32> to vector<16x1xf32>
    %50 = vector.broadcast %49 : vector<16x1xf32> to vector<16x16xf32>
    %51 = arith.subf %47, %50 : vector<16x16xf32>
    %52 = math.exp %51 : vector<16x16xf32>
    %cst_14 = arith.constant dense<0.000000e+00> : vector<16xf32>
    %53 = vector.multi_reduction <add>, %52, %cst_14 [1] : vector<16x16xf32> to vector<16xf32>
    %54 = vector.shape_cast %53 : vector<16xf32> to vector<16x1xf32>
    %55 = tpu.reciprocal %54 {approx = true} : vector<16x1xf32> -> vector<16x1xf32>
    %56 = vector.broadcast %55 : vector<16x1xf32> to vector<16x16xf32>
    %57 = arith.mulf %52, %56 : vector<16x16xf32>
    %58 = vector.extract_strided_slice %23 {offsets = [0, 6], sizes = [16, 6], strides = [1, 1]} : vector<16x12xf32> to vector<16x6xf32>
    %cst_15 = arith.constant dense<0.000000e+00> : vector<16x6xf32>
    %59 = tpu.matmul %57, %58, %cst_15 {dimension_numbers = #tpu.dot_dimension_numbers<[1], [0], [0], [1], [0, 0, 1, 1], [], []>} : vector<16x16xf32>, vector<16x6xf32>, vector<16x6xf32> -> vector<16x6xf32>
    %60 = arith.addf %41, %59 : vector<16x6xf32>
    %61 = arith.addf %2, %60 : vector<16x6xf32>
    %cst_16 = arith.constant dense<0.000000e+00> : vector<16xf32>
    %62 = vector.multi_reduction <add>, %61, %cst_16 [1] : vector<16x6xf32> to vector<16xf32>
    %63 = vector.shape_cast %62 : vector<16xf32> to vector<16x1xf32>
    %cst_17 = arith.constant 6.000000e+00 : f32
    %64 = vector.broadcast %cst_17 : f32 to vector<16x1xf32>
    %65 = arith.divf %63, %64 : vector<16x1xf32>
    %66 = vector.broadcast %65 : vector<16x1xf32> to vector<16x6xf32>
    %67 = arith.subf %61, %66 : vector<16x6xf32>
    %68 = arith.mulf %67, %67 : vector<16x6xf32>
    %cst_18 = arith.constant dense<0.000000e+00> : vector<16xf32>
    %69 = vector.multi_reduction <add>, %68, %cst_18 [1] : vector<16x6xf32> to vector<16xf32>
    %70 = vector.shape_cast %69 : vector<16xf32> to vector<16x1xf32>
    %cst_19 = arith.constant 6.000000e+00 : f32
    %71 = vector.broadcast %cst_19 : f32 to vector<16x1xf32>
    %72 = arith.divf %70, %71 : vector<16x1xf32>
    %73 = vector.broadcast %65 : vector<16x1xf32> to vector<16x6xf32>
    %74 = arith.subf %61, %73 : vector<16x6xf32>
    %cst_20 = arith.constant 9.99999974E-6 : f32
    %75 = vector.broadcast %cst_20 : f32 to vector<16x1xf32>
    %76 = arith.addf %72, %75 : vector<16x1xf32>
    %77 = math.rsqrt %76 : vector<16x1xf32>
    %78 = vector.broadcast %77 : vector<16x1xf32> to vector<16x6xf32>
    %79 = arith.mulf %74, %78 : vector<16x6xf32>
    %80 = vector.broadcast %16 : vector<1x6xf32> to vector<16x6xf32>
    %81 = arith.mulf %79, %80 : vector<16x6xf32>
    %82 = vector.broadcast %17 : vector<1x6xf32> to vector<16x6xf32>
    %83 = arith.addf %81, %82 : vector<16x6xf32>
    %cst_21 = arith.constant dense<0.000000e+00> : vector<16x24xf32>
    %84 = tpu.matmul %3, %14, %cst_21 {dimension_numbers = #tpu.dot_dimension_numbers<[1], [0], [0], [1], [0, 0, 1, 1], [], []>} : vector<16x6xf32>, vector<6x24xf32>, vector<16x24xf32> -> vector<16x24xf32>
    %85 = vector.extract_strided_slice %84 {offsets = [0, 0], sizes = [16, 6], strides = [1, 1]} : vector<16x24xf32> to vector<16x6xf32>
    %86 = vector.extract_strided_slice %84 {offsets = [0, 6], sizes = [16, 6], strides = [1, 1]} : vector<16x24xf32> to vector<16x6xf32>
    %87 = vector.extract_strided_slice %84 {offsets = [0, 12], sizes = [16, 12], strides = [1, 1]} : vector<16x24xf32> to vector<16x12xf32>
    %88 = vector.extract_strided_slice %85 {offsets = [0, 0], sizes = [16, 3], strides = [1, 1]} : vector<16x6xf32> to vector<16x3xf32>
    %89 = vector.extract_strided_slice %86 {offsets = [0, 0], sizes = [16, 3], strides = [1, 1]} : vector<16x6xf32> to vector<16x3xf32>
    %90 = tpu.transpose %89, [1, 0] : vector<16x3xf32> -> vector<3x16xf32>
    %cst_22 = arith.constant dense<0.000000e+00> : vector<16x16xf32>
    %91 = tpu.matmul %88, %90, %cst_22 {dimension_numbers = #tpu.dot_dimension_numbers<[1], [0], [0], [1], [0, 0, 1, 1], [], []>} : vector<16x3xf32>, vector<3x16xf32>, vector<16x16xf32> -> vector<16x16xf32>
    %cst_23 = arith.constant -1.000000e+09 : f32
    %92 = vector.broadcast %cst_23 : f32 to vector<16x16xf32>
    %93 = arith.select %9, %92, %91 : vector<16x16xi1>, vector<16x16xf32>
    %cst_24 = arith.constant dense<0xFF800000> : vector<16xf32>
    %94 = vector.multi_reduction <maximumf>, %93, %cst_24 [1] : vector<16x16xf32> to vector<16xf32>
    %95 = vector.shape_cast %94 : vector<16xf32> to vector<16x1xf32>
    %96 = vector.broadcast %95 : vector<16x1xf32> to vector<16x16xf32>
    %97 = arith.subf %93, %96 : vector<16x16xf32>
    %98 = math.exp %97 : vector<16x16xf32>
    %cst_25 = arith.constant dense<0.000000e+00> : vector<16xf32>
    %99 = vector.multi_reduction <add>, %98, %cst_25 [1] : vector<16x16xf32> to vector<16xf32>
    %100 = vector.shape_cast %99 : vector<16xf32> to vector<16x1xf32>
    %101 = tpu.reciprocal %100 {approx = true} : vector<16x1xf32> -> vector<16x1xf32>
    %102 = vector.broadcast %101 : vector<16x1xf32> to vector<16x16xf32>
    %103 = arith.mulf %98, %102 : vector<16x16xf32>
    %104 = vector.extract_strided_slice %87 {offsets = [0, 0], sizes = [16, 6], strides = [1, 1]} : vector<16x12xf32> to vector<16x6xf32>
    %cst_26 = arith.constant dense<0.000000e+00> : vector<16x6xf32>
    %105 = tpu.matmul %103, %104, %cst_26 {dimension_numbers = #tpu.dot_dimension_numbers<[1], [0], [0], [1], [0, 0, 1, 1], [], []>} : vector<16x16xf32>, vector<16x6xf32>, vector<16x6xf32> -> vector<16x6xf32>
    %106 = vector.extract_strided_slice %85 {offsets = [0, 3], sizes = [16, 3], strides = [1, 1]} : vector<16x6xf32> to vector<16x3xf32>
    %107 = vector.extract_strided_slice %86 {offsets = [0, 3], sizes = [16, 3], strides = [1, 1]} : vector<16x6xf32> to vector<16x3xf32>
    %108 = tpu.transpose %107, [1, 0] : vector<16x3xf32> -> vector<3x16xf32>
    %cst_27 = arith.constant dense<0.000000e+00> : vector<16x16xf32>
    %109 = tpu.matmul %106, %108, %cst_27 {dimension_numbers = #tpu.dot_dimension_numbers<[1], [0], [0], [1], [0, 0, 1, 1], [], []>} : vector<16x3xf32>, vector<3x16xf32>, vector<16x16xf32> -> vector<16x16xf32>
    %cst_28 = arith.constant -1.000000e+09 : f32
    %110 = vector.broadcast %cst_28 : f32 to vector<16x16xf32>
    %111 = arith.select %9, %110, %109 : vector<16x16xi1>, vector<16x16xf32>
    %cst_29 = arith.constant dense<0xFF800000> : vector<16xf32>
    %112 = vector.multi_reduction <maximumf>, %111, %cst_29 [1] : vector<16x16xf32> to vector<16xf32>
    %113 = vector.shape_cast %112 : vector<16xf32> to vector<16x1xf32>
    %114 = vector.broadcast %113 : vector<16x1xf32> to vector<16x16xf32>
    %115 = arith.subf %111, %114 : vector<16x16xf32>
    %116 = math.exp %115 : vector<16x16xf32>
    %cst_30 = arith.constant dense<0.000000e+00> : vector<16xf32>
    %117 = vector.multi_reduction <add>, %116, %cst_30 [1] : vector<16x16xf32> to vector<16xf32>
    %118 = vector.shape_cast %117 : vector<16xf32> to vector<16x1xf32>
    %119 = tpu.reciprocal %118 {approx = true} : vector<16x1xf32> -> vector<16x1xf32>
    %120 = vector.broadcast %119 : vector<16x1xf32> to vector<16x16xf32>
    %121 = arith.mulf %116, %120 : vector<16x16xf32>
    %122 = vector.extract_strided_slice %87 {offsets = [0, 6], sizes = [16, 6], strides = [1, 1]} : vector<16x12xf32> to vector<16x6xf32>
    %cst_31 = arith.constant dense<0.000000e+00> : vector<16x6xf32>
    %123 = tpu.matmul %121, %122, %cst_31 {dimension_numbers = #tpu.dot_dimension_numbers<[1], [0], [0], [1], [0, 0, 1, 1], [], []>} : vector<16x16xf32>, vector<16x6xf32>, vector<16x6xf32> -> vector<16x6xf32>
    %124 = arith.addf %105, %123 : vector<16x6xf32>
    %125 = arith.addf %3, %124 : vector<16x6xf32>
    %cst_32 = arith.constant dense<0.000000e+00> : vector<16xf32>
    %126 = vector.multi_reduction <add>, %125, %cst_32 [1] : vector<16x6xf32> to vector<16xf32>
    %127 = vector.shape_cast %126 : vector<16xf32> to vector<16x1xf32>
    %cst_33 = arith.constant 6.000000e+00 : f32
    %128 = vector.broadcast %cst_33 : f32 to vector<16x1xf32>
    %129 = arith.divf %127, %128 : vector<16x1xf32>
    %130 = vector.broadcast %129 : vector<16x1xf32> to vector<16x6xf32>
    %131 = arith.subf %125, %130 : vector<16x6xf32>
    %132 = arith.mulf %131, %131 : vector<16x6xf32>
    %cst_34 = arith.constant dense<0.000000e+00> : vector<16xf32>
    %133 = vector.multi_reduction <add>, %132, %cst_34 [1] : vector<16x6xf32> to vector<16xf32>
    %134 = vector.shape_cast %133 : vector<16xf32> to vector<16x1xf32>
    %cst_35 = arith.constant 6.000000e+00 : f32
    %135 = vector.broadcast %cst_35 : f32 to vector<16x1xf32>
    %136 = arith.divf %134, %135 : vector<16x1xf32>
    %137 = vector.broadcast %129 : vector<16x1xf32> to vector<16x6xf32>
    %138 = arith.subf %125, %137 : vector<16x6xf32>
    %cst_36 = arith.constant 9.99999974E-6 : f32
    %139 = vector.broadcast %cst_36 : f32 to vector<16x1xf32>
    %140 = arith.addf %136, %139 : vector<16x1xf32>
    %141 = math.rsqrt %140 : vector<16x1xf32>
    %142 = vector.broadcast %141 : vector<16x1xf32> to vector<16x6xf32>
    %143 = arith.mulf %138, %142 : vector<16x6xf32>
    %144 = vector.broadcast %18 : vector<1x6xf32> to vector<16x6xf32>
    %145 = arith.mulf %143, %144 : vector<16x6xf32>
    %146 = vector.broadcast %19 : vector<1x6xf32> to vector<16x6xf32>
    %147 = arith.addf %145, %146 : vector<16x6xf32>
    %148 = vector.extract_strided_slice %14 {offsets = [0, 0], sizes = [6, 6], strides = [1, 1]} : vector<6x24xf32> to vector<6x6xf32>
    %cst_37 = arith.constant dense<0.000000e+00> : vector<16x6xf32>
    %149 = tpu.matmul %147, %148, %cst_37 {dimension_numbers = #tpu.dot_dimension_numbers<[1], [0], [0], [1], [0, 0, 1, 1], [], []>} : vector<16x6xf32>, vector<6x6xf32>, vector<16x6xf32> -> vector<16x6xf32>
    %150 = vector.extract_strided_slice %14 {offsets = [0, 6], sizes = [6, 18], strides = [1, 1]} : vector<6x24xf32> to vector<6x18xf32>
    %cst_38 = arith.constant dense<0.000000e+00> : vector<16x18xf32>
    %151 = tpu.matmul %83, %150, %cst_38 {dimension_numbers = #tpu.dot_dimension_numbers<[1], [0], [0], [1], [0, 0, 1, 1], [], []>} : vector<16x6xf32>, vector<6x18xf32>, vector<16x18xf32> -> vector<16x18xf32>
    %152 = vector.extract_strided_slice %151 {offsets = [0, 0], sizes = [16, 6], strides = [1, 1]} : vector<16x18xf32> to vector<16x6xf32>
    %153 = vector.extract_strided_slice %151 {offsets = [0, 6], sizes = [16, 12], strides = [1, 1]} : vector<16x18xf32> to vector<16x12xf32>
    %154 = vector.extract_strided_slice %149 {offsets = [0, 0], sizes = [16, 3], strides = [1, 1]} : vector<16x6xf32> to vector<16x3xf32>
    %155 = vector.extract_strided_slice %152 {offsets = [0, 0], sizes = [16, 3], strides = [1, 1]} : vector<16x6xf32> to vector<16x3xf32>
    %156 = tpu.transpose %155, [1, 0] : vector<16x3xf32> -> vector<3x16xf32>
    %cst_39 = arith.constant dense<0.000000e+00> : vector<16x16xf32>
    %157 = tpu.matmul %154, %156, %cst_39 {dimension_numbers = #tpu.dot_dimension_numbers<[1], [0], [0], [1], [0, 0, 1, 1], [], []>} : vector<16x3xf32>, vector<3x16xf32>, vector<16x16xf32> -> vector<16x16xf32>
    %cst_40 = arith.constant -1.000000e+09 : f32
    %158 = vector.broadcast %cst_40 : f32 to vector<16x16xf32>
    %159 = arith.select %12, %158, %157 : vector<16x16xi1>, vector<16x16xf32>
    %cst_41 = arith.constant dense<0xFF800000> : vector<16xf32>
    %160 = vector.multi_reduction <maximumf>, %159, %cst_41 [1] : vector<16x16xf32> to vector<16xf32>
    %161 = vector.shape_cast %160 : vector<16xf32> to vector<16x1xf32>
    %162 = vector.broadcast %161 : vector<16x1xf32> to vector<16x16xf32>
    %163 = arith.subf %159, %162 : vector<16x16xf32>
    %164 = math.exp %163 : vector<16x16xf32>
    %cst_42 = arith.constant dense<0.000000e+00> : vector<16xf32>
    %165 = vector.multi_reduction <add>, %164, %cst_42 [1] : vector<16x16xf32> to vector<16xf32>
    %166 = vector.shape_cast %165 : vector<16xf32> to vector<16x1xf32>
    %167 = tpu.reciprocal %166 {approx = true} : vector<16x1xf32> -> vector<16x1xf32>
    %168 = vector.broadcast %167 : vector<16x1xf32> to vector<16x16xf32>
    %169 = arith.mulf %164, %168 : vector<16x16xf32>
    %170 = vector.extract_strided_slice %153 {offsets = [0, 0], sizes = [16, 6], strides = [1, 1]} : vector<16x12xf32> to vector<16x6xf32>
    %cst_43 = arith.constant dense<0.000000e+00> : vector<16x6xf32>
    %171 = tpu.matmul %169, %170, %cst_43 {dimension_numbers = #tpu.dot_dimension_numbers<[1], [0], [0], [1], [0, 0, 1, 1], [], []>} : vector<16x16xf32>, vector<16x6xf32>, vector<16x6xf32> -> vector<16x6xf32>
    %172 = vector.extract_strided_slice %149 {offsets = [0, 3], sizes = [16, 3], strides = [1, 1]} : vector<16x6xf32> to vector<16x3xf32>
    %173 = vector.extract_strided_slice %152 {offsets = [0, 3], sizes = [16, 3], strides = [1, 1]} : vector<16x6xf32> to vector<16x3xf32>
    %174 = tpu.transpose %173, [1, 0] : vector<16x3xf32> -> vector<3x16xf32>
    %cst_44 = arith.constant dense<0.000000e+00> : vector<16x16xf32>
    %175 = tpu.matmul %172, %174, %cst_44 {dimension_numbers = #tpu.dot_dimension_numbers<[1], [0], [0], [1], [0, 0, 1, 1], [], []>} : vector<16x3xf32>, vector<3x16xf32>, vector<16x16xf32> -> vector<16x16xf32>
    %cst_45 = arith.constant -1.000000e+09 : f32
    %176 = vector.broadcast %cst_45 : f32 to vector<16x16xf32>
    %177 = arith.select %12, %176, %175 : vector<16x16xi1>, vector<16x16xf32>
    %cst_46 = arith.constant dense<0xFF800000> : vector<16xf32>
    %178 = vector.multi_reduction <maximumf>, %177, %cst_46 [1] : vector<16x16xf32> to vector<16xf32>
    %179 = vector.shape_cast %178 : vector<16xf32> to vector<16x1xf32>
    %180 = vector.broadcast %179 : vector<16x1xf32> to vector<16x16xf32>
    %181 = arith.subf %177, %180 : vector<16x16xf32>
    %182 = math.exp %181 : vector<16x16xf32>
    %cst_47 = arith.constant dense<0.000000e+00> : vector<16xf32>
    %183 = vector.multi_reduction <add>, %182, %cst_47 [1] : vector<16x16xf32> to vector<16xf32>
    %184 = vector.shape_cast %183 : vector<16xf32> to vector<16x1xf32>
    %185 = tpu.reciprocal %184 {approx = true} : vector<16x1xf32> -> vector<16x1xf32>
    %186 = vector.broadcast %185 : vector<16x1xf32> to vector<16x16xf32>
    %187 = arith.mulf %182, %186 : vector<16x16xf32>
    %188 = vector.extract_strided_slice %153 {offsets = [0, 6], sizes = [16, 6], strides = [1, 1]} : vector<16x12xf32> to vector<16x6xf32>
    %cst_48 = arith.constant dense<0.000000e+00> : vector<16x6xf32>
    %189 = tpu.matmul %187, %188, %cst_48 {dimension_numbers = #tpu.dot_dimension_numbers<[1], [0], [0], [1], [0, 0, 1, 1], [], []>} : vector<16x16xf32>, vector<16x6xf32>, vector<16x6xf32> -> vector<16x6xf32>
    %190 = arith.addf %171, %189 : vector<16x6xf32>
    %191 = arith.addf %147, %190 : vector<16x6xf32>
    %cst_49 = arith.constant dense<0.000000e+00> : vector<16xf32>
    %192 = vector.multi_reduction <add>, %191, %cst_49 [1] : vector<16x6xf32> to vector<16xf32>
    %193 = vector.shape_cast %192 : vector<16xf32> to vector<16x1xf32>
    %cst_50 = arith.constant 6.000000e+00 : f32
    %194 = vector.broadcast %cst_50 : f32 to vector<16x1xf32>
    %195 = arith.divf %193, %194 : vector<16x1xf32>
    %196 = vector.broadcast %195 : vector<16x1xf32> to vector<16x6xf32>
    %197 = arith.subf %191, %196 : vector<16x6xf32>
    %198 = arith.mulf %197, %197 : vector<16x6xf32>
    %cst_51 = arith.constant dense<0.000000e+00> : vector<16xf32>
    %199 = vector.multi_reduction <add>, %198, %cst_51 [1] : vector<16x6xf32> to vector<16xf32>
    %200 = vector.shape_cast %199 : vector<16xf32> to vector<16x1xf32>
    %cst_52 = arith.constant 6.000000e+00 : f32
    %201 = vector.broadcast %cst_52 : f32 to vector<16x1xf32>
    %202 = arith.divf %200, %201 : vector<16x1xf32>
    %203 = vector.broadcast %195 : vector<16x1xf32> to vector<16x6xf32>
    %204 = arith.subf %191, %203 : vector<16x6xf32>
    %cst_53 = arith.constant 9.99999974E-6 : f32
    %205 = vector.broadcast %cst_53 : f32 to vector<16x1xf32>
    %206 = arith.addf %202, %205 : vector<16x1xf32>
    %207 = math.rsqrt %206 : vector<16x1xf32>
    %208 = vector.broadcast %207 : vector<16x1xf32> to vector<16x6xf32>
    %209 = arith.mulf %204, %208 : vector<16x6xf32>
    %210 = vector.broadcast %18 : vector<1x6xf32> to vector<16x6xf32>
    %211 = arith.mulf %209, %210 : vector<16x6xf32>
    %212 = vector.broadcast %19 : vector<1x6xf32> to vector<16x6xf32>
    %213 = arith.addf %211, %212 : vector<16x6xf32>
    %cst_54 = arith.constant dense<0.000000e+00> : vector<16x128xf32>
    %214 = tpu.matmul %213, %15, %cst_54 {dimension_numbers = #tpu.dot_dimension_numbers<[1], [0], [0], [1], [0, 0, 1, 1], [], []>} : vector<16x6xf32>, vector<6x128xf32>, vector<16x128xf32> -> vector<16x128xf32>
    %c0_55 = arith.constant 0 : index
    %c0_56 = arith.constant 0 : index
    %215 = vector.load %arg2[%c0_55, %c0_56] : memref<16x128xf32, #tpu.memory_space<vmem>>, vector<16x128xf32>
    tpu.vector_store %arg2[%c0_55, %c0_56], %214 {strides = array<i32>} : memref<16x128xf32, #tpu.memory_space<vmem>>, vector<16x128xf32>,
    return
  }
}

</mosaic_0001>

<llo_original>
// kernel: transformer_forward.1
$region0: #{transformer_forward.1}
  #allocation0 [shape = 'u32[]', space=smem, size = 0x4, offset = 0x4, fixed_abs, tag = 'smem constant byte address 0x4 - core index']
  #allocation1 [shape = 'u32[144,128]{1,0:T(1,128)}', space=vmem, size = 0x12000, scoped, tag = 'internal scratch']
  %s0 = inlined_call_operand.vmem [shape: f32[80,16], index: 0, kind: input, shape index: {}]
  %s1 = inlined_call_operand.vmem [shape: f32[32,128], index: 1, kind: input, shape index: {}]
  %s2 = inlined_call_operand.hbm [shape: f32[16,128], index: 2, kind: output, shape index: {}]
  %s3 = sld [smem:[#allocation0]]
  $region18: #{transformer_forward.1} parent=0
    _
  %s5 = ssub.s32 1, %s3
  %s6 = scalar_select 0, %s5, %s3
  $region1: #{transformer_forward.1} parent=0
    #allocation2 [shape = 'u8[8192]{0}', space=vmem, size = 0x2000, scoped, tag = 'output window, operand 0, single buffered']
    #allocation3 [shape = 's32[1]{0}', space=sflag, size = 0x4, scoped, tag = 'scoped memory for transformer_forward.1']
    %7 = vsyncpa [#allocation3], 0
    // Predicated region
    $region2: #{transformer_forward.1} parent=1 // pred_check
      _
    $region3: #{transformer_forward.1} parent=1 // pred_check_branch
      %9 = sbr.rel (0) target = $region5
    $region4: #{transformer_forward.1} parent=1 // pred_region
      _
    $region5: #{transformer_forward.1} parent=1 // pred_fallthru
      _
    // Predicated region
    $region6: #{transformer_forward.1} parent=1 // pred_check
      _
    $region7: #{transformer_forward.1} parent=1 // pred_check_branch
      %11 = sbr.rel (0) target = $region9
    $region8: #{transformer_forward.1} parent=1 // pred_region
      _
    $region9: #{transformer_forward.1} parent=1 // pred_fallthru
      _
    %v12 = vld [vmem:[%s0] sm:$0xff]
    %v13 = vld [vmem:[%s0 + $0x8] sm:$0xff]
    %v14 = vld [vmem:[%s0 + $0x10] sm:$0xff]
    %v15 = vld [vmem:[%s0 + $0x18] sm:$0xff]
    %v16 = vld [vmem:[%s0 + $0x20] sm:$0xff]
    %v17 = vld [vmem:[%s0 + $0x28] sm:$0xff]
    %v18 = vld [vmem:[%s0 + $0x30] sm:$0xff]
    %v19 = vld [vmem:[%s0 + $0x38] sm:$0xff]
    %v20 = vld [vmem:[%s0 + $0x40] sm:$0xff]
    %v21 = vld [vmem:[%s0 + $0x48] sm:$0xff]
    %v22 = vld [vmem:[%s1] sm:$0xff]
    %v23 = vld [vmem:[%s1 + $0x8] sm:$0xff]
    %v24 = vld [vmem:[%s1 + $0x10] sm:$0xff]
    %v25 = vld [vmem:[%s1 + $0x18] sm:$0xff]
    %vm26 = vcmp.gt.f32.partialorder %v16, 0.5
    %vm27 = vcmp.gt.f32.partialorder %v17, 0.5
    %vm28 = vcmp.gt.f32.partialorder %v18, 0.5
    %vm29 = vcmp.gt.f32.partialorder %v19, 0.5
    %vm30 = vcmp.gt.f32.partialorder %v20, 0.5
    %vm31 = vcmp.gt.f32.partialorder %v21, 0.5
    %vm32 = vcmask 48128
    %v34 = vsel %vm32, %v12, 0
    %v37 = vsel %vm32, %v13, 0
    %vm39 = vcmask 1045504
    %v41 = vsel %vm39, %v22, 0
    %43 = vmatprep.subr.mxu0 0.0
    %44 = vmatpush1.msra.mxu0 %v41
    %45 = vmatprep.subr.mxu0 0.0
    %46 = vmatpush1.msra.mxu0 0.0
    %47 = vmatprep.subr.mxu0 0.0
    %48 = vmatpush1.msra.mxu0 0.0
    %49 = vmatprep.subr.mxu0 0.0
    %50 = vmatpush1.msra.mxu0 0.0
    %51 = vmatprep.subr.mxu0 0.0
    %52 = vmatpush1.msra.mxu0 0.0
    %53 = vmatprep.subr.mxu0 0.0
    %54 = vmatpush1.msra.mxu0 0.0
    %55 = vmatprep.subr.mxu0 0.0
    %56 = vmatpush1.msra.mxu0 0.0
    %57 = vmatprep.subr.mxu0 0.0
    %58 = vmatpush1.msra.mxu0 0.0
    %59 = vmatprep.subr.mxu0 0.0
    %60 = vmatpush1.msra.mxu0 0.0
    %61 = vmatprep.subr.mxu0 0.0
    %62 = vmatpush1.msra.mxu0 0.0
    %63 = vmatprep.subr.mxu0 0.0
    %64 = vmatpush1.msra.mxu0 0.0
    %65 = vmatprep.subr.mxu0 0.0
    %66 = vmatpush1.msra.mxu0 0.0
    %67 = vmatprep.subr.mxu0 0.0
    %68 = vmatpush1.msra.mxu0 0.0
    %69 = vmatprep.subr.mxu0 0.0
    %70 = vmatpush1.msra.mxu0 0.0
    %71 = vmatprep.subr.mxu0 0.0
    %72 = vmatpush1.msra.mxu0 0.0
    %73 = vmatprep.subr.mxu0 0.0
    %74 = vmatpush1.msra.mxu0 0.0
    %75 = vmatprep.subr.mxu0 0.0
    %76 = vmatpush1.msra.mxu0 0.0
    %77 = vmatprep.subr.mxu0 0.0
    %78 = vmatpush1.msra.mxu0 0.0
    %79 = vmatprep.subr.mxu0 0.0
    %80 = vmatpush1.msra.mxu0 0.0
    %81 = vmatprep.subr.mxu0 0.0
    %82 = vmatpush1.msra.mxu0 0.0
    %83 = vmatprep.subr.mxu0 0.0
    %84 = vmatpush1.msra.mxu0 0.0
    %85 = vmatprep.subr.mxu0 0.0
    %86 = vmatpush1.msra.mxu0 0.0
    %87 = vmatprep.subr.mxu0 0.0
    %88 = vmatpush1.msra.mxu0 0.0
    %89 = vmatprep.subr.mxu0 0.0
    %90 = vmatpush1.msra.mxu0 0.0
    %91 = vmatprep.subr.mxu0 0.0
    %92 = vmatpush1.msra.mxu0 0.0
    %93 = vmatprep.subr.mxu0 0.0
    %94 = vmatpush1.msra.mxu0 0.0
    %95 = vmatprep.subr.mxu0 0.0
    %96 = vmatpush1.msra.mxu0 0.0
    %97 = vmatprep.subr.mxu0 0.0
    %98 = vmatpush1.msra.mxu0 0.0
    %99 = vmatprep.subr.mxu0 0.0
    %100 = vmatpush1.msra.mxu0 0.0
    %101 = vmatprep.subr.mxu0 0.0
    %102 = vmatpush1.msra.mxu0 0.0
    %103 = vmatprep.subr.mxu0 0.0
    %104 = vmatpush1.msra.mxu0 0.0
    %105 = vmatprep.subr.mxu0 0.0
    %106 = vmatpush1.msra.mxu0 0.0
    %107 = vmatprep.mubr.f32.mxu0 0.0
    %108 = vmatmul.mubr.f32.gmra.mrb[0].mxu0 %v34
    %v109 = vpop.f32.mrb[0].mxu0
    %v110 = vadd.f32 0.0, %v109
    %v111 = vpop.f32.mrb[0].mxu0
    %112 = vmatprep.mubr.f32.mxu0 0.0
    %113 = vmatmul.mubr.f32.gmra.mrb[0].mxu0 %v37
    %v114 = vpop.f32.mrb[0].mxu0
    %v115 = vadd.f32 0.0, %v114
    %v116 = vpop.f32.mrb[0].mxu0
    %117 = vdwg.mxu0
    %120 = vrot.lane.b32.xlu0 %v110, 122
    %v121 = vpop.permute.xlu0 %120
    %122 = vrot.lane.b32.xlu0 %v115, 122
    %v123 = vpop.permute.xlu0 %122
    %vm124 = vcmask 23552
    %v125 = vsel %vm124, %v110, 0
    %v127 = vsel %vm124, %v115, 0
    %v129 = vsel %vm124, %v121, 0
    %v131 = vsel %vm124, %v123, 0
    %133 = vmatprep.subr.mxu0 0.0
    %134 = vmatpush1.xpose.msra.mxu0 %v129
    %135 = vmatprep.subr.mxu0 0.0
    %136 = vmatpush1.xpose.msra.mxu0 %v131
    %137 = vmatprep.subr.mxu0 0.0
    %138 = vmatpush1.xpose.msra.mxu0 0.0
    %139 = vmatprep.subr.mxu0 0.0
    %140 = vmatpush1.xpose.msra.mxu0 0.0
    %141 = vmatprep.subr.mxu0 0.0
    %142 = vmatpush1.xpose.msra.mxu0 0.0
    %143 = vmatprep.subr.mxu0 0.0
    %144 = vmatpush1.xpose.msra.mxu0 0.0
    %145 = vmatprep.subr.mxu0 0.0
    %146 = vmatpush1.xpose.msra.mxu0 0.0
    %147 = vmatprep.subr.mxu0 0.0
    %148 = vmatpush1.xpose.msra.mxu0 0.0
    %149 = vmatprep.subr.mxu0 0.0
    %150 = vmatpush1.xpose.msra.mxu0 0.0
    %151 = vmatprep.subr.mxu0 0.0
    %152 = vmatpush1.xpose.msra.mxu0 0.0
    %153 = vmatprep.subr.mxu0 0.0
    %154 = vmatpush1.xpose.msra.mxu0 0.0
    %155 = vmatprep.subr.mxu0 0.0
    %156 = vmatpush1.xpose.msra.mxu0 0.0
    %157 = vmatprep.subr.mxu0 0.0
    %158 = vmatpush1.xpose.msra.mxu0 0.0
    %159 = vmatprep.subr.mxu0 0.0
    %160 = vmatpush1.xpose.msra.mxu0 0.0
    %161 = vmatprep.subr.mxu0 0.0
    %162 = vmatpush1.xpose.msra.mxu0 0.0
    %163 = vmatprep.subr.mxu0 0.0
    %164 = vmatpush1.xpose.msra.mxu0 0.0
    %165 = vmatprep.subr.mxu0 0.0
    %166 = vmatpush1.xpose.msra.mxu0 0.0
    %167 = vmatprep.subr.mxu0 0.0
    %168 = vmatpush1.xpose.msra.mxu0 0.0
    %169 = vmatprep.subr.mxu0 0.0
    %170 = vmatpush1.xpose.msra.mxu0 0.0
    %171 = vmatprep.subr.mxu0 0.0
    %172 = vmatpush1.xpose.msra.mxu0 0.0
    %173 = vmatprep.subr.mxu0 0.0
    %174 = vmatpush1.xpose.msra.mxu0 0.0
    %175 = vmatprep.subr.mxu0 0.0
    %176 = vmatpush1.xpose.msra.mxu0 0.0
    %177 = vmatprep.subr.mxu0 0.0
    %178 = vmatpush1.xpose.msra.mxu0 0.0
    %179 = vmatprep.subr.mxu0 0.0
    %180 = vmatpush1.xpose.msra.mxu0 0.0
    %181 = vmatprep.subr.mxu0 0.0
    %182 = vmatpush1.xpose.msra.mxu0 0.0
    %183 = vmatprep.subr.mxu0 0.0
    %184 = vmatpush1.xpose.msra.mxu0 0.0
    %185 = vmatprep.subr.mxu0 0.0
    %186 = vmatpush1.xpose.msra.mxu0 0.0
    %187 = vmatprep.subr.mxu0 0.0
    %188 = vmatpush1.xpose.msra.mxu0 0.0
    %189 = vmatprep.subr.mxu0 0.0
    %190 = vmatpush1.xpose.msra.mxu0 0.0
    %191 = vmatprep.subr.mxu0 0.0
    %192 = vmatpush1.xpose.msra.mxu0 0.0
    %193 = vmatprep.subr.mxu0 0.0
    %194 = vmatpush1.xpose.msra.mxu0 0.0
    %195 = vmatprep.subr.mxu0 0.0
    %196 = vmatpush1.xpose.msra.mxu0 0.0
    %197 = vmatprep.mubr.f32.mxu0 0.0
    %198 = vmatmul.mubr.f32.gmra.mrb[0].mxu0 %v125
    %v199 = vpop.f32.mrb[0].mxu0
    %v200 = vadd.f32 0.0, %v199
    %v201 = vpop.f32.mrb[0].mxu0
    %202 = vmatprep.mubr.f32.mxu0 0.0
    %203 = vmatmul.mubr.f32.gmra.mrb[0].mxu0 %v127
    %v204 = vpop.f32.mrb[0].mxu0
    %v205 = vadd.f32 0.0, %v204
    %v206 = vpop.f32.mrb[0].mxu0
    %207 = vdwg.mxu0
    %v208 = vsel %vm26, -1e+09, %v200
    %v209 = vsel %vm27, -1e+09, %v205
    %vm210 = vcmask 130048
    %v211 = vsel %vm210, %v208, -inf
    %212 = vmax.xlane.f32.xlu0 %v211
    %v213 = vpop.xlane.xlu0 %212
    %v214 = vsel %vm210, %v209, -inf
    %215 = vmax.xlane.f32.xlu0 %v214
    %v216 = vpop.xlane.xlu0 %215
    %v217 = vsub.f32 %v208, %v213
    %v218 = vsub.f32 %v209, %v216
    %v219 = vmul.f32 %v217, 1.442695
    %v220 = vpow.pop %v219
    %v221 = vmul.f32 %v218, 1.442695
    %v222 = vpow.pop %v221
    %v223 = vsel %vm210, %v220, 0.0
    %224 = vadd.xlane.f32.xlu0 %v223
    %v225 = vpop.xlane.xlu0 %224
    %v226 = vsel %vm210, %v222, 0.0
    %227 = vadd.xlane.f32.xlu0 %v226
    %v228 = vpop.xlane.xlu0 %227
    %v229 = vrcp.pop %v225
    %v230 = vrcp.pop %v228
    %v231 = vmul.f32 %v220, %v229
    %v232 = vmul.f32 %v222, %v230
    %233 = vrot.lane.b32.xlu0 %v110, 125
    %v234 = vpop.permute.xlu0 %233
    %235 = vrot.lane.b32.xlu0 %v115, 125
    %v236 = vpop.permute.xlu0 %235
    %237 = vrot.lane.b32.xlu0 %v110, 119
    %v238 = vpop.permute.xlu0 %237
    %239 = vrot.lane.b32.xlu0 %v115, 119
    %v240 = vpop.permute.xlu0 %239
    %v241 = vsel %vm124, %v234, 0
    %v243 = vsel %vm124, %v236, 0
    %v245 = vsel %vm124, %v238, 0
    %v247 = vsel %vm124, %v240, 0
    %249 = vmatprep.subr.mxu0 0.0
    %250 = vmatpush1.xpose.msra.mxu0 %v245
    %251 = vmatprep.subr.mxu0 0.0
    %252 = vmatpush1.xpose.msra.mxu0 %v247
    %253 = vmatprep.subr.mxu0 0.0
    %254 = vmatpush1.xpose.msra.mxu0 0.0
    %255 = vmatprep.subr.mxu0 0.0
    %256 = vmatpush1.xpose.msra.mxu0 0.0
    %257 = vmatprep.subr.mxu0 0.0
    %258 = vmatpush1.xpose.msra.mxu0 0.0
    %259 = vmatprep.subr.mxu0 0.0
    %260 = vmatpush1.xpose.msra.mxu0 0.0
    %261 = vmatprep.subr.mxu0 0.0
    %262 = vmatpush1.xpose.msra.mxu0 0.0
    %263 = vmatprep.subr.mxu0 0.0
    %264 = vmatpush1.xpose.msra.mxu0 0.0
    %265 = vmatprep.subr.mxu0 0.0
    %266 = vmatpush1.xpose.msra.mxu0 0.0
    %267 = vmatprep.subr.mxu0 0.0
    %268 = vmatpush1.xpose.msra.mxu0 0.0
    %269 = vmatprep.subr.mxu0 0.0
    %270 = vmatpush1.xpose.msra.mxu0 0.0
    %271 = vmatprep.subr.mxu0 0.0
    %272 = vmatpush1.xpose.msra.mxu0 0.0
    %273 = vmatprep.subr.mxu0 0.0
    %274 = vmatpush1.xpose.msra.mxu0 0.0
    %275 = vmatprep.subr.mxu0 0.0
    %276 = vmatpush1.xpose.msra.mxu0 0.0
    %277 = vmatprep.subr.mxu0 0.0
    %278 = vmatpush1.xpose.msra.mxu0 0.0
    %279 = vmatprep.subr.mxu0 0.0
    %280 = vmatpush1.xpose.msra.mxu0 0.0
    %281 = vmatprep.subr.mxu0 0.0
    %282 = vmatpush1.xpose.msra.mxu0 0.0
    %283 = vmatprep.subr.mxu0 0.0
    %284 = vmatpush1.xpose.msra.mxu0 0.0
    %285 = vmatprep.subr.mxu0 0.0
    %286 = vmatpush1.xpose.msra.mxu0 0.0
    %287 = vmatprep.subr.mxu0 0.0
    %288 = vmatpush1.xpose.msra.mxu0 0.0
    %289 = vmatprep.subr.mxu0 0.0
    %290 = vmatpush1.xpose.msra.mxu0 0.0
    %291 = vmatprep.subr.mxu0 0.0
    %292 = vmatpush1.xpose.msra.mxu0 0.0
    %293 = vmatprep.subr.mxu0 0.0
    %294 = vmatpush1.xpose.msra.mxu0 0.0
    %295 = vmatprep.subr.mxu0 0.0
    %296 = vmatpush1.xpose.msra.mxu0 0.0
    %297 = vmatprep.subr.mxu0 0.0
    %298 = vmatpush1.xpose.msra.mxu0 0.0
    %299 = vmatprep.subr.mxu0 0.0
    %300 = vmatpush1.xpose.msra.mxu0 0.0
    %301 = vmatprep.subr.mxu0 0.0
    %302 = vmatpush1.xpose.msra.mxu0 0.0
    %303 = vmatprep.subr.mxu0 0.0
    %304 = vmatpush1.xpose.msra.mxu0 0.0
    %305 = vmatprep.subr.mxu0 0.0
    %306 = vmatpush1.xpose.msra.mxu0 0.0
    %307 = vmatprep.subr.mxu0 0.0
    %308 = vmatpush1.xpose.msra.mxu0 0.0
    %309 = vmatprep.subr.mxu0 0.0
    %310 = vmatpush1.xpose.msra.mxu0 0.0
    %311 = vmatprep.subr.mxu0 0.0
    %312 = vmatpush1.xpose.msra.mxu0 0.0
    %313 = vmatprep.mubr.f32.mxu0 0.0
    %314 = vmatmul.mubr.f32.gmra.mrb[0].mxu0 %v241
    %v315 = vpop.f32.mrb[0].mxu0
    %v316 = vadd.f32 0.0, %v315
    %v317 = vpop.f32.mrb[0].mxu0
    %318 = vmatprep.mubr.f32.mxu0 0.0
    %319 = vmatmul.mubr.f32.gmra.mrb[0].mxu0 %v243
    %v320 = vpop.f32.mrb[0].mxu0
    %v321 = vadd.f32 0.0, %v320
    %v322 = vpop.f32.mrb[0].mxu0
    %323 = vdwg.mxu0
    %v324 = vsel %vm26, -1e+09, %v316
    %v325 = vsel %vm27, -1e+09, %v321
    %v326 = vsel %vm210, %v324, -inf
    %327 = vmax.xlane.f32.xlu0 %v326
    %v328 = vpop.xlane.xlu0 %327
    %v329 = vsel %vm210, %v325, -inf
    %330 = vmax.xlane.f32.xlu0 %v329
    %v331 = vpop.xlane.xlu0 %330
    %v332 = vsub.f32 %v324, %v328
    %v333 = vsub.f32 %v325, %v331
    %v334 = vmul.f32 %v332, 1.442695
    %v335 = vpow.pop %v334
    %v336 = vmul.f32 %v333, 1.442695
    %v337 = vpow.pop %v336
    %v338 = vsel %vm210, %v335, 0.0
    %339 = vadd.xlane.f32.xlu0 %v338
    %v340 = vpop.xlane.xlu0 %339
    %v341 = vsel %vm210, %v337, 0.0
    %342 = vadd.xlane.f32.xlu0 %v341
    %v343 = vpop.xlane.xlu0 %342
    %v344 = vrcp.pop %v340
    %v345 = vrcp.pop %v343
    %v346 = vmul.f32 %v335, %v344
    %v347 = vmul.f32 %v337, %v345
    %348 = vrot.lane.b32.xlu0 %v110, 110
    %v349 = vpop.permute.xlu0 %348
    %350 = vrot.lane.b32.xlu0 %v115, 110
    %v351 = vpop.permute.xlu0 %350
    %v355 = vsel %vm210, %v346, 0
    %v358 = vsel %vm210, %v347, 0
    %360 = vmatprep.subr.mxu0 0.0
    %361 = vmatpush1.msra.mxu0 %v349
    %362 = vmatprep.subr.mxu0 0.0
    %363 = vmatpush1.msra.mxu0 %v351
    %364 = vmatprep.subr.mxu0 0.0
    %365 = vmatpush1.msra.mxu0 0.0
    %366 = vmatprep.subr.mxu0 0.0
    %367 = vmatpush1.msra.mxu0 0.0
    %368 = vmatprep.subr.mxu0 0.0
    %369 = vmatpush1.msra.mxu0 0.0
    %370 = vmatprep.subr.mxu0 0.0
    %371 = vmatpush1.msra.mxu0 0.0
    %372 = vmatprep.subr.mxu0 0.0
    %373 = vmatpush1.msra.mxu0 0.0
    %374 = vmatprep.subr.mxu0 0.0
    %375 = vmatpush1.msra.mxu0 0.0
    %376 = vmatprep.subr.mxu0 0.0
    %377 = vmatpush1.msra.mxu0 0.0
    %378 = vmatprep.subr.mxu0 0.0
    %379 = vmatpush1.msra.mxu0 0.0
    %380 = vmatprep.subr.mxu0 0.0
    %381 = vmatpush1.msra.mxu0 0.0
    %382 = vmatprep.subr.mxu0 0.0
    %383 = vmatpush1.msra.mxu0 0.0
    %384 = vmatprep.subr.mxu0 0.0
    %385 = vmatpush1.msra.mxu0 0.0
    %386 = vmatprep.subr.mxu0 0.0
    %387 = vmatpush1.msra.mxu0 0.0
    %388 = vmatprep.subr.mxu0 0.0
    %389 = vmatpush1.msra.mxu0 0.0
    %390 = vmatprep.subr.mxu0 0.0
    %391 = vmatpush1.msra.mxu0 0.0
    %392 = vmatprep.subr.mxu0 0.0
    %393 = vmatpush1.msra.mxu0 0.0
    %394 = vmatprep.subr.mxu0 0.0
    %395 = vmatpush1.msra.mxu0 0.0
    %396 = vmatprep.subr.mxu0 0.0
    %397 = vmatpush1.msra.mxu0 0.0
    %398 = vmatprep.subr.mxu0 0.0
    %399 = vmatpush1.msra.mxu0 0.0
    %400 = vmatprep.subr.mxu0 0.0
    %401 = vmatpush1.msra.mxu0 0.0
    %402 = vmatprep.subr.mxu0 0.0
    %403 = vmatpush1.msra.mxu0 0.0
    %404 = vmatprep.subr.mxu0 0.0
    %405 = vmatpush1.msra.mxu0 0.0
    %406 = vmatprep.subr.mxu0 0.0
    %407 = vmatpush1.msra.mxu0 0.0
    %408 = vmatprep.subr.mxu0 0.0
    %409 = vmatpush1.msra.mxu0 0.0
    %410 = vmatprep.subr.mxu0 0.0
    %411 = vmatpush1.msra.mxu0 0.0
    %412 = vmatprep.subr.mxu0 0.0
    %413 = vmatpush1.msra.mxu0 0.0
    %414 = vmatprep.subr.mxu0 0.0
    %415 = vmatpush1.msra.mxu0 0.0
    %416 = vmatprep.subr.mxu0 0.0
    %417 = vmatpush1.msra.mxu0 0.0
    %418 = vmatprep.subr.mxu0 0.0
    %419 = vmatpush1.msra.mxu0 0.0
    %420 = vmatprep.subr.mxu0 0.0
    %421 = vmatpush1.msra.mxu0 0.0
    %422 = vmatprep.subr.mxu0 0.0
    %423 = vmatpush1.msra.mxu0 0.0
    %424 = vmatprep.mubr.f32.mxu0 0.0
    %425 = vmatmul.mubr.f32.gmra.mrb[0].mxu0 %v355
    %v426 = vpop.f32.mrb[0].mxu0
    %v427 = vadd.f32 0.0, %v426
    %v428 = vpop.f32.mrb[0].mxu0
    %429 = vmatprep.mubr.f32.mxu0 0.0
    %430 = vmatmul.mubr.f32.gmra.mrb[0].mxu0 %v358
    %v431 = vpop.f32.mrb[0].mxu0
    %v432 = vadd.f32 0.0, %v431
    %v433 = vpop.f32.mrb[0].mxu0
    %434 = vdwg.mxu0
    %435 = vrot.lane.b32.xlu0 %v110, 116
    %v436 = vpop.permute.xlu0 %435
    %437 = vrot.lane.b32.xlu0 %v115, 116
    %v438 = vpop.permute.xlu0 %437
    %v442 = vsel %vm210, %v231, 0
    %v445 = vsel %vm210, %v232, 0
    %447 = vmatprep.subr.mxu0 0.0
    %448 = vmatpush1.msra.mxu0 %v436
    %449 = vmatprep.subr.mxu0 0.0
    %450 = vmatpush1.msra.mxu0 %v438
    %451 = vmatprep.subr.mxu0 0.0
    %452 = vmatpush1.msra.mxu0 0.0
    %453 = vmatprep.subr.mxu0 0.0
    %454 = vmatpush1.msra.mxu0 0.0
    %455 = vmatprep.subr.mxu0 0.0
    %456 = vmatpush1.msra.mxu0 0.0
    %457 = vmatprep.subr.mxu0 0.0
    %458 = vmatpush1.msra.mxu0 0.0
    %459 = vmatprep.subr.mxu0 0.0
    %460 = vmatpush1.msra.mxu0 0.0
    %461 = vmatprep.subr.mxu0 0.0
    %462 = vmatpush1.msra.mxu0 0.0
    %463 = vmatprep.subr.mxu0 0.0
    %464 = vmatpush1.msra.mxu0 0.0
    %465 = vmatprep.subr.mxu0 0.0
    %466 = vmatpush1.msra.mxu0 0.0
    %467 = vmatprep.subr.mxu0 0.0
    %468 = vmatpush1.msra.mxu0 0.0
    %469 = vmatprep.subr.mxu0 0.0
    %470 = vmatpush1.msra.mxu0 0.0
    %471 = vmatprep.subr.mxu0 0.0
    %472 = vmatpush1.msra.mxu0 0.0
    %473 = vmatprep.subr.mxu0 0.0
    %474 = vmatpush1.msra.mxu0 0.0
    %475 = vmatprep.subr.mxu0 0.0
    %476 = vmatpush1.msra.mxu0 0.0
    %477 = vmatprep.subr.mxu0 0.0
    %478 = vmatpush1.msra.mxu0 0.0
    %479 = vmatprep.subr.mxu0 0.0
    %480 = vmatpush1.msra.mxu0 0.0
    %481 = vmatprep.subr.mxu0 0.0
    %482 = vmatpush1.msra.mxu0 0.0
    %483 = vmatprep.subr.mxu0 0.0
    %484 = vmatpush1.msra.mxu0 0.0
    %485 = vmatprep.subr.mxu0 0.0
    %486 = vmatpush1.msra.mxu0 0.0
    %487 = vmatprep.subr.mxu0 0.0
    %488 = vmatpush1.msra.mxu0 0.0
    %489 = vmatprep.subr.mxu0 0.0
    %490 = vmatpush1.msra.mxu0 0.0
    %491 = vmatprep.subr.mxu0 0.0
    %492 = vmatpush1.msra.mxu0 0.0
    %493 = vmatprep.subr.mxu0 0.0
    %494 = vmatpush1.msra.mxu0 0.0
    %495 = vmatprep.subr.mxu0 0.0
    %496 = vmatpush1.msra.mxu0 0.0
    %497 = vmatprep.subr.mxu0 0.0
    %498 = vmatpush1.msra.mxu0 0.0
    %499 = vmatprep.subr.mxu0 0.0
    %500 = vmatpush1.msra.mxu0 0.0
    %501 = vmatprep.subr.mxu0 0.0
    %502 = vmatpush1.msra.mxu0 0.0
    %503 = vmatprep.subr.mxu0 0.0
    %504 = vmatpush1.msra.mxu0 0.0
    %505 = vmatprep.subr.mxu0 0.0
    %506 = vmatpush1.msra.mxu0 0.0
    %507 = vmatprep.subr.mxu0 0.0
    %508 = vmatpush1.msra.mxu0 0.0
    %509 = vmatprep.subr.mxu0 0.0
    %510 = vmatpush1.msra.mxu0 0.0
    %511 = vmatprep.mubr.f32.mxu0 0.0
    %512 = vmatmul.mubr.f32.gmra.mrb[0].mxu0 %v442
    %v513 = vpop.f32.mrb[0].mxu0
    %v514 = vadd.f32 %v427, %v513
    %v515 = vpop.f32.mrb[0].mxu0
    %516 = vmatprep.mubr.f32.mxu0 0.0
    %517 = vmatmul.mubr.f32.gmra.mrb[0].mxu0 %v445
    %v518 = vpop.f32.mrb[0].mxu0
    %v519 = vadd.f32 %v432, %v518
    %v520 = vpop.f32.mrb[0].mxu0
    %521 = vdwg.mxu0
    %v522 = vadd.f32 %v12, %v514
    %v523 = vadd.f32 %v13, %v519
    %v524 = vsel %vm32, %v522, 0.0
    %525 = vadd.xlane.f32.xlu0 %v524
    %v526 = vpop.xlane.xlu0 %525
    %v527 = vsel %vm32, %v523, 0.0
    %528 = vadd.xlane.f32.xlu0 %v527
    %v529 = vpop.xlane.xlu0 %528
    %v530 = vrcp.pop 6.0
    %v531 = vmul.f32 %v526, %v530
    %v532 = vmul.f32 %v529, %v530
    %v533 = vsub.f32 %v522, %v531
    %v534 = vsub.f32 %v523, %v532
    %v535 = vmul.f32 %v533, %v533
    %v536 = vmul.f32 %v534, %v534
    %v537 = vsel %vm32, %v535, 0.0
    %538 = vadd.xlane.f32.xlu0 %v537
    %v539 = vpop.xlane.xlu0 %538
    %v540 = vsel %vm32, %v536, 0.0
    %541 = vadd.xlane.f32.xlu0 %v540
    %v542 = vpop.xlane.xlu0 %541
    %v543 = vmul.f32 %v539, %v530
    %v544 = vmul.f32 %v542, %v530
    %v545 = vadd.f32 %v543, 1e-05
    %v546 = vadd.f32 %v544, 1e-05
    %v547 = vrsqrt.pop %v545
    %v548 = vrsqrt.pop %v546
    %v549 = vmul.f32 %v533, %v547
    %v550 = vmul.f32 %v534, %v548
    %v551 = vlaneseq
    %v552 = vshrl.u32 %v551, 7
    %v553 = vsub.s32 0, %v552
    %v554 = vrot.slane %v25, %v553
    %v555 = vmul.f32 %v549, %v554
    %v556 = vmul.f32 %v550, %v554
    %v557 = vlaneseq
    %v558 = vshrl.u32 %v557, 7
    %v559 = vsub.s32 1, %v558
    %v560 = vrot.slane %v25, %v559
    %v561 = vadd.f32 %v555, %v560
    %v562 = vadd.f32 %v556, %v560
    %v564 = vsel %vm32, %v14, 0
    %v567 = vsel %vm32, %v15, 0
    %v570 = vsel %vm39, %v23, 0
    %572 = vmatprep.subr.mxu0 0.0
    %573 = vmatpush1.msra.mxu0 %v570
    %574 = vmatprep.subr.mxu0 0.0
    %575 = vmatpush1.msra.mxu0 0.0
    %576 = vmatprep.subr.mxu0 0.0
    %577 = vmatpush1.msra.mxu0 0.0
    %578 = vmatprep.subr.mxu0 0.0
    %579 = vmatpush1.msra.mxu0 0.0
    %580 = vmatprep.subr.mxu0 0.0
    %581 = vmatpush1.msra.mxu0 0.0
    %582 = vmatprep.subr.mxu0 0.0
    %583 = vmatpush1.msra.mxu0 0.0
    %584 = vmatprep.subr.mxu0 0.0
    %585 = vmatpush1.msra.mxu0 0.0
    %586 = vmatprep.subr.mxu0 0.0
    %587 = vmatpush1.msra.mxu0 0.0
    %588 = vmatprep.subr.mxu0 0.0
    %589 = vmatpush1.msra.mxu0 0.0
    %590 = vmatprep.subr.mxu0 0.0
    %591 = vmatpush1.msra.mxu0 0.0
    %592 = vmatprep.subr.mxu0 0.0
    %593 = vmatpush1.msra.mxu0 0.0
    %594 = vmatprep.subr.mxu0 0.0
    %595 = vmatpush1.msra.mxu0 0.0
    %596 = vmatprep.subr.mxu0 0.0
    %597 = vmatpush1.msra.mxu0 0.0
    %598 = vmatprep.subr.mxu0 0.0
    %599 = vmatpush1.msra.mxu0 0.0
    %600 = vmatprep.subr.mxu0 0.0
    %601 = vmatpush1.msra.mxu0 0.0
    %602 = vmatprep.subr.mxu0 0.0
    %603 = vmatpush1.msra.mxu0 0.0
    %604 = vmatprep.subr.mxu0 0.0
    %605 = vmatpush1.msra.mxu0 0.0
    %606 = vmatprep.subr.mxu0 0.0
    %607 = vmatpush1.msra.mxu0 0.0
    %608 = vmatprep.subr.mxu0 0.0
    %609 = vmatpush1.msra.mxu0 0.0
    %610 = vmatprep.subr.mxu0 0.0
    %611 = vmatpush1.msra.mxu0 0.0
    %612 = vmatprep.subr.mxu0 0.0
    %613 = vmatpush1.msra.mxu0 0.0
    %614 = vmatprep.subr.mxu0 0.0
    %615 = vmatpush1.msra.mxu0 0.0
    %616 = vmatprep.subr.mxu0 0.0
    %617 = vmatpush1.msra.mxu0 0.0
    %618 = vmatprep.subr.mxu0 0.0
    %619 = vmatpush1.msra.mxu0 0.0
    %620 = vmatprep.subr.mxu0 0.0
    %621 = vmatpush1.msra.mxu0 0.0
    %622 = vmatprep.subr.mxu0 0.0
    %623 = vmatpush1.msra.mxu0 0.0
    %624 = vmatprep.subr.mxu0 0.0
    %625 = vmatpush1.msra.mxu0 0.0
    %626 = vmatprep.subr.mxu0 0.0
    %627 = vmatpush1.msra.mxu0 0.0
    %628 = vmatprep.subr.mxu0 0.0
    %629 = vmatpush1.msra.mxu0 0.0
    %630 = vmatprep.subr.mxu0 0.0
    %631 = vmatpush1.msra.mxu0 0.0
    %632 = vmatprep.subr.mxu0 0.0
    %633 = vmatpush1.msra.mxu0 0.0
    %634 = vmatprep.subr.mxu0 0.0
    %635 = vmatpush1.msra.mxu0 0.0
    %636 = vmatprep.mubr.f32.mxu0 0.0
    %637 = vmatmul.mubr.f32.gmra.mrb[0].mxu0 %v564
    %v638 = vpop.f32.mrb[0].mxu0
    %v639 = vadd.f32 0.0, %v638
    %v640 = vpop.f32.mrb[0].mxu0
    %641 = vmatprep.mubr.f32.mxu0 0.0
    %642 = vmatmul.mubr.f32.gmra.mrb[0].mxu0 %v567
    %v643 = vpop.f32.mrb[0].mxu0
    %v644 = vadd.f32 0.0, %v643
    %v645 = vpop.f32.mrb[0].mxu0
    %646 = vdwg.mxu0
    %649 = vrot.lane.b32.xlu0 %v639, 122
    %v650 = vpop.permute.xlu0 %649
    %651 = vrot.lane.b32.xlu0 %v644, 122
    %v652 = vpop.permute.xlu0 %651
    %v653 = vsel %vm124, %v639, 0
    %v655 = vsel %vm124, %v644, 0
    %v657 = vsel %vm124, %v650, 0
    %v659 = vsel %vm124, %v652, 0
    %661 = vmatprep.subr.mxu0 0.0
    %662 = vmatpush1.xpose.msra.mxu0 %v657
    %663 = vmatprep.subr.mxu0 0.0
    %664 = vmatpush1.xpose.msra.mxu0 %v659
    %665 = vmatprep.subr.mxu0 0.0
    %666 = vmatpush1.xpose.msra.mxu0 0.0
    %667 = vmatprep.subr.mxu0 0.0
    %668 = vmatpush1.xpose.msra.mxu0 0.0
    %669 = vmatprep.subr.mxu0 0.0
    %670 = vmatpush1.xpose.msra.mxu0 0.0
    %671 = vmatprep.subr.mxu0 0.0
    %672 = vmatpush1.xpose.msra.mxu0 0.0
    %673 = vmatprep.subr.mxu0 0.0
    %674 = vmatpush1.xpose.msra.mxu0 0.0
    %675 = vmatprep.subr.mxu0 0.0
    %676 = vmatpush1.xpose.msra.mxu0 0.0
    %677 = vmatprep.subr.mxu0 0.0
    %678 = vmatpush1.xpose.msra.mxu0 0.0
    %679 = vmatprep.subr.mxu0 0.0
    %680 = vmatpush1.xpose.msra.mxu0 0.0
    %681 = vmatprep.subr.mxu0 0.0
    %682 = vmatpush1.xpose.msra.mxu0 0.0
    %683 = vmatprep.subr.mxu0 0.0
    %684 = vmatpush1.xpose.msra.mxu0 0.0
    %685 = vmatprep.subr.mxu0 0.0
    %686 = vmatpush1.xpose.msra.mxu0 0.0
    %687 = vmatprep.subr.mxu0 0.0
    %688 = vmatpush1.xpose.msra.mxu0 0.0
    %689 = vmatprep.subr.mxu0 0.0
    %690 = vmatpush1.xpose.msra.mxu0 0.0
    %691 = vmatprep.subr.mxu0 0.0
    %692 = vmatpush1.xpose.msra.mxu0 0.0
    %693 = vmatprep.subr.mxu0 0.0
    %694 = vmatpush1.xpose.msra.mxu0 0.0
    %695 = vmatprep.subr.mxu0 0.0
    %696 = vmatpush1.xpose.msra.mxu0 0.0
    %697 = vmatprep.subr.mxu0 0.0
    %698 = vmatpush1.xpose.msra.mxu0 0.0
    %699 = vmatprep.subr.mxu0 0.0
    %700 = vmatpush1.xpose.msra.mxu0 0.0
    %701 = vmatprep.subr.mxu0 0.0
    %702 = vmatpush1.xpose.msra.mxu0 0.0
    %703 = vmatprep.subr.mxu0 0.0
    %704 = vmatpush1.xpose.msra.mxu0 0.0
    %705 = vmatprep.subr.mxu0 0.0
    %706 = vmatpush1.xpose.msra.mxu0 0.0
    %707 = vmatprep.subr.mxu0 0.0
    %708 = vmatpush1.xpose.msra.mxu0 0.0
    %709 = vmatprep.subr.mxu0 0.0
    %710 = vmatpush1.xpose.msra.mxu0 0.0
    %711 = vmatprep.subr.mxu0 0.0
    %712 = vmatpush1.xpose.msra.mxu0 0.0
    %713 = vmatprep.subr.mxu0 0.0
    %714 = vmatpush1.xpose.msra.mxu0 0.0
    %715 = vmatprep.subr.mxu0 0.0
    %716 = vmatpush1.xpose.msra.mxu0 0.0
    %717 = vmatprep.subr.mxu0 0.0
    %718 = vmatpush1.xpose.msra.mxu0 0.0
    %719 = vmatprep.subr.mxu0 0.0
    %720 = vmatpush1.xpose.msra.mxu0 0.0
    %721 = vmatprep.subr.mxu0 0.0
    %722 = vmatpush1.xpose.msra.mxu0 0.0
    %723 = vmatprep.subr.mxu0 0.0
    %724 = vmatpush1.xpose.msra.mxu0 0.0
    %725 = vmatprep.mubr.f32.mxu0 0.0
    %726 = vmatmul.mubr.f32.gmra.mrb[0].mxu0 %v653
    %v727 = vpop.f32.mrb[0].mxu0
    %v728 = vadd.f32 0.0, %v727
    %v729 = vpop.f32.mrb[0].mxu0
    %730 = vmatprep.mubr.f32.mxu0 0.0
    %731 = vmatmul.mubr.f32.gmra.mrb[0].mxu0 %v655
    %v732 = vpop.f32.mrb[0].mxu0
    %v733 = vadd.f32 0.0, %v732
    %v734 = vpop.f32.mrb[0].mxu0
    %735 = vdwg.mxu0
    %v736 = vsel %vm28, -1e+09, %v728
    %v737 = vsel %vm29, -1e+09, %v733
    %v738 = vsel %vm210, %v736, -inf
    %739 = vmax.xlane.f32.xlu0 %v738
    %v740 = vpop.xlane.xlu0 %739
    %v741 = vsel %vm210, %v737, -inf
    %742 = vmax.xlane.f32.xlu0 %v741
    %v743 = vpop.xlane.xlu0 %742
    %v744 = vsub.f32 %v736, %v740
    %v745 = vsub.f32 %v737, %v743
    %v746 = vmul.f32 %v744, 1.442695
    %v747 = vpow.pop %v746
    %v748 = vmul.f32 %v745, 1.442695
    %v749 = vpow.pop %v748
    %v750 = vsel %vm210, %v747, 0.0
    %751 = vadd.xlane.f32.xlu0 %v750
    %v752 = vpop.xlane.xlu0 %751
    %v753 = vsel %vm210, %v749, 0.0
    %754 = vadd.xlane.f32.xlu0 %v753
    %v755 = vpop.xlane.xlu0 %754
    %v756 = vrcp.pop %v752
    %v757 = vrcp.pop %v755
    %v758 = vmul.f32 %v747, %v756
    %v759 = vmul.f32 %v749, %v757
    %760 = vrot.lane.b32.xlu0 %v639, 125
    %v761 = vpop.permute.xlu0 %760
    %762 = vrot.lane.b32.xlu0 %v644, 125
    %v763 = vpop.permute.xlu0 %762
    %764 = vrot.lane.b32.xlu0 %v639, 119
    %v765 = vpop.permute.xlu0 %764
    %766 = vrot.lane.b32.xlu0 %v644, 119
    %v767 = vpop.permute.xlu0 %766
    %v768 = vsel %vm124, %v761, 0
    %v770 = vsel %vm124, %v763, 0
    %v772 = vsel %vm124, %v765, 0
    %v774 = vsel %vm124, %v767, 0
    %776 = vmatprep.subr.mxu0 0.0
    %777 = vmatpush1.xpose.msra.mxu0 %v772
    %778 = vmatprep.subr.mxu0 0.0
    %779 = vmatpush1.xpose.msra.mxu0 %v774
    %780 = vmatprep.subr.mxu0 0.0
    %781 = vmatpush1.xpose.msra.mxu0 0.0
    %782 = vmatprep.subr.mxu0 0.0
    %783 = vmatpush1.xpose.msra.mxu0 0.0
    %784 = vmatprep.subr.mxu0 0.0
    %785 = vmatpush1.xpose.msra.mxu0 0.0
    %786 = vmatprep.subr.mxu0 0.0
    %787 = vmatpush1.xpose.msra.mxu0 0.0
    %788 = vmatprep.subr.mxu0 0.0
    %789 = vmatpush1.xpose.msra.mxu0 0.0
    %790 = vmatprep.subr.mxu0 0.0
    %791 = vmatpush1.xpose.msra.mxu0 0.0
    %792 = vmatprep.subr.mxu0 0.0
    %793 = vmatpush1.xpose.msra.mxu0 0.0
    %794 = vmatprep.subr.mxu0 0.0
    %795 = vmatpush1.xpose.msra.mxu0 0.0
    %796 = vmatprep.subr.mxu0 0.0
    %797 = vmatpush1.xpose.msra.mxu0 0.0
    %798 = vmatprep.subr.mxu0 0.0
    %799 = vmatpush1.xpose.msra.mxu0 0.0
    %800 = vmatprep.subr.mxu0 0.0
    %801 = vmatpush1.xpose.msra.mxu0 0.0
    %802 = vmatprep.subr.mxu0 0.0
    %803 = vmatpush1.xpose.msra.mxu0 0.0
    %804 = vmatprep.subr.mxu0 0.0
    %805 = vmatpush1.xpose.msra.mxu0 0.0
    %806 = vmatprep.subr.mxu0 0.0
    %807 = vmatpush1.xpose.msra.mxu0 0.0
    %808 = vmatprep.subr.mxu0 0.0
    %809 = vmatpush1.xpose.msra.mxu0 0.0
    %810 = vmatprep.subr.mxu0 0.0
    %811 = vmatpush1.xpose.msra.mxu0 0.0
    %812 = vmatprep.subr.mxu0 0.0
    %813 = vmatpush1.xpose.msra.mxu0 0.0
    %814 = vmatprep.subr.mxu0 0.0
    %815 = vmatpush1.xpose.msra.mxu0 0.0
    %816 = vmatprep.subr.mxu0 0.0
    %817 = vmatpush1.xpose.msra.mxu0 0.0
    %818 = vmatprep.subr.mxu0 0.0
    %819 = vmatpush1.xpose.msra.mxu0 0.0
    %820 = vmatprep.subr.mxu0 0.0
    %821 = vmatpush1.xpose.msra.mxu0 0.0
    %822 = vmatprep.subr.mxu0 0.0
    %823 = vmatpush1.xpose.msra.mxu0 0.0
    %824 = vmatprep.subr.mxu0 0.0
    %825 = vmatpush1.xpose.msra.mxu0 0.0
    %826 = vmatprep.subr.mxu0 0.0
    %827 = vmatpush1.xpose.msra.mxu0 0.0
    %828 = vmatprep.subr.mxu0 0.0
    %829 = vmatpush1.xpose.msra.mxu0 0.0
    %830 = vmatprep.subr.mxu0 0.0
    %831 = vmatpush1.xpose.msra.mxu0 0.0
    %832 = vmatprep.subr.mxu0 0.0
    %833 = vmatpush1.xpose.msra.mxu0 0.0
    %834 = vmatprep.subr.mxu0 0.0
    %835 = vmatpush1.xpose.msra.mxu0 0.0
    %836 = vmatprep.subr.mxu0 0.0
    %837 = vmatpush1.xpose.msra.mxu0 0.0
    %838 = vmatprep.subr.mxu0 0.0
    %839 = vmatpush1.xpose.msra.mxu0 0.0
    %840 = vmatprep.mubr.f32.mxu0 0.0
    %841 = vmatmul.mubr.f32.gmra.mrb[0].mxu0 %v768
    %v842 = vpop.f32.mrb[0].mxu0
    %v843 = vadd.f32 0.0, %v842
    %v844 = vpop.f32.mrb[0].mxu0
    %845 = vmatprep.mubr.f32.mxu0 0.0
    %846 = vmatmul.mubr.f32.gmra.mrb[0].mxu0 %v770
    %v847 = vpop.f32.mrb[0].mxu0
    %v848 = vadd.f32 0.0, %v847
    %v849 = vpop.f32.mrb[0].mxu0
    %850 = vdwg.mxu0
    %v851 = vsel %vm28, -1e+09, %v843
    %v852 = vsel %vm29, -1e+09, %v848
    %v853 = vsel %vm210, %v851, -inf
    %854 = vmax.xlane.f32.xlu0 %v853
    %v855 = vpop.xlane.xlu0 %854
    %v856 = vsel %vm210, %v852, -inf
    %857 = vmax.xlane.f32.xlu0 %v856
    %v858 = vpop.xlane.xlu0 %857
    %v859 = vsub.f32 %v851, %v855
    %v860 = vsub.f32 %v852, %v858
    %v861 = vmul.f32 %v859, 1.442695
    %v862 = vpow.pop %v861
    %v863 = vmul.f32 %v860, 1.442695
    %v864 = vpow.pop %v863
    %v865 = vsel %vm210, %v862, 0.0
    %866 = vadd.xlane.f32.xlu0 %v865
    %v867 = vpop.xlane.xlu0 %866
    %v868 = vsel %vm210, %v864, 0.0
    %869 = vadd.xlane.f32.xlu0 %v868
    %v870 = vpop.xlane.xlu0 %869
    %v871 = vrcp.pop %v867
    %v872 = vrcp.pop %v870
    %v873 = vmul.f32 %v862, %v871
    %v874 = vmul.f32 %v864, %v872
    %875 = vrot.lane.b32.xlu0 %v639, 110
    %v876 = vpop.permute.xlu0 %875
    %877 = vrot.lane.b32.xlu0 %v644, 110
    %v878 = vpop.permute.xlu0 %877
    %v882 = vsel %vm210, %v873, 0
    %v885 = vsel %vm210, %v874, 0
    %887 = vmatprep.subr.mxu0 0.0
    %888 = vmatpush1.msra.mxu0 %v876
    %889 = vmatprep.subr.mxu0 0.0
    %890 = vmatpush1.msra.mxu0 %v878
    %891 = vmatprep.subr.mxu0 0.0
    %892 = vmatpush1.msra.mxu0 0.0
    %893 = vmatprep.subr.mxu0 0.0
    %894 = vmatpush1.msra.mxu0 0.0
    %895 = vmatprep.subr.mxu0 0.0
    %896 = vmatpush1.msra.mxu0 0.0
    %897 = vmatprep.subr.mxu0 0.0
    %898 = vmatpush1.msra.mxu0 0.0
    %899 = vmatprep.subr.mxu0 0.0
    %900 = vmatpush1.msra.mxu0 0.0
    %901 = vmatprep.subr.mxu0 0.0
    %902 = vmatpush1.msra.mxu0 0.0
    %903 = vmatprep.subr.mxu0 0.0
    %904 = vmatpush1.msra.mxu0 0.0
    %905 = vmatprep.subr.mxu0 0.0
    %906 = vmatpush1.msra.mxu0 0.0
    %907 = vmatprep.subr.mxu0 0.0
    %908 = vmatpush1.msra.mxu0 0.0
    %909 = vmatprep.subr.mxu0 0.0
    %910 = vmatpush1.msra.mxu0 0.0
    %911 = vmatprep.subr.mxu0 0.0
    %912 = vmatpush1.msra.mxu0 0.0
    %913 = vmatprep.subr.mxu0 0.0
    %914 = vmatpush1.msra.mxu0 0.0
    %915 = vmatprep.subr.mxu0 0.0
    %916 = vmatpush1.msra.mxu0 0.0
    %917 = vmatprep.subr.mxu0 0.0
    %918 = vmatpush1.msra.mxu0 0.0
    %919 = vmatprep.subr.mxu0 0.0
    %920 = vmatpush1.msra.mxu0 0.0
    %921 = vmatprep.subr.mxu0 0.0
    %922 = vmatpush1.msra.mxu0 0.0
    %923 = vmatprep.subr.mxu0 0.0
    %924 = vmatpush1.msra.mxu0 0.0
    %925 = vmatprep.subr.mxu0 0.0
    %926 = vmatpush1.msra.mxu0 0.0
    %927 = vmatprep.subr.mxu0 0.0
    %928 = vmatpush1.msra.mxu0 0.0
    %929 = vmatprep.subr.mxu0 0.0
    %930 = vmatpush1.msra.mxu0 0.0
    %931 = vmatprep.subr.mxu0 0.0
    %932 = vmatpush1.msra.mxu0 0.0
    %933 = vmatprep.subr.mxu0 0.0
    %934 = vmatpush1.msra.mxu0 0.0
    %935 = vmatprep.subr.mxu0 0.0
    %936 = vmatpush1.msra.mxu0 0.0
    %937 = vmatprep.subr.mxu0 0.0
    %938 = vmatpush1.msra.mxu0 0.0
    %939 = vmatprep.subr.mxu0 0.0
    %940 = vmatpush1.msra.mxu0 0.0
    %941 = vmatprep.subr.mxu0 0.0
    %942 = vmatpush1.msra.mxu0 0.0
    %943 = vmatprep.subr.mxu0 0.0
    %944 = vmatpush1.msra.mxu0 0.0
    %945 = vmatprep.subr.mxu0 0.0
    %946 = vmatpush1.msra.mxu0 0.0
    %947 = vmatprep.subr.mxu0 0.0
    %948 = vmatpush1.msra.mxu0 0.0
    %949 = vmatprep.subr.mxu0 0.0
    %950 = vmatpush1.msra.mxu0 0.0
    %951 = vmatprep.mubr.f32.mxu0 0.0
    %952 = vmatmul.mubr.f32.gmra.mrb[0].mxu0 %v882
    %v953 = vpop.f32.mrb[0].mxu0
    %v954 = vadd.f32 0.0, %v953
    %v955 = vpop.f32.mrb[0].mxu0
    %956 = vmatprep.mubr.f32.mxu0 0.0
    %957 = vmatmul.mubr.f32.gmra.mrb[0].mxu0 %v885
    %v958 = vpop.f32.mrb[0].mxu0
    %v959 = vadd.f32 0.0, %v958
    %v960 = vpop.f32.mrb[0].mxu0
    %961 = vdwg.mxu0
    %962 = vrot.lane.b32.xlu0 %v639, 116
    %v963 = vpop.permute.xlu0 %962
    %964 = vrot.lane.b32.xlu0 %v644, 116
    %v965 = vpop.permute.xlu0 %964
    %v969 = vsel %vm210, %v758, 0
    %v972 = vsel %vm210, %v759, 0
    %974 = vmatprep.subr.mxu0 0.0
    %975 = vmatpush1.msra.mxu0 %v963
    %976 = vmatprep.subr.mxu0 0.0
    %977 = vmatpush1.msra.mxu0 %v965
    %978 = vmatprep.subr.mxu0 0.0
    %979 = vmatpush1.msra.mxu0 0.0
    %980 = vmatprep.subr.mxu0 0.0
    %981 = vmatpush1.msra.mxu0 0.0
    %982 = vmatprep.subr.mxu0 0.0
    %983 = vmatpush1.msra.mxu0 0.0
    %984 = vmatprep.subr.mxu0 0.0
    %985 = vmatpush1.msra.mxu0 0.0
    %986 = vmatprep.subr.mxu0 0.0
    %987 = vmatpush1.msra.mxu0 0.0
    %988 = vmatprep.subr.mxu0 0.0
    %989 = vmatpush1.msra.mxu0 0.0
    %990 = vmatprep.subr.mxu0 0.0
    %991 = vmatpush1.msra.mxu0 0.0
    %992 = vmatprep.subr.mxu0 0.0
    %993 = vmatpush1.msra.mxu0 0.0
    %994 = vmatprep.subr.mxu0 0.0
    %995 = vmatpush1.msra.mxu0 0.0
    %996 = vmatprep.subr.mxu0 0.0
    %997 = vmatpush1.msra.mxu0 0.0
    %998 = vmatprep.subr.mxu0 0.0
    %999 = vmatpush1.msra.mxu0 0.0
    %1000 = vmatprep.subr.mxu0 0.0
    %1001 = vmatpush1.msra.mxu0 0.0
    %1002 = vmatprep.subr.mxu0 0.0
    %1003 = vmatpush1.msra.mxu0 0.0
    %1004 = vmatprep.subr.mxu0 0.0
    %1005 = vmatpush1.msra.mxu0 0.0
    %1006 = vmatprep.subr.mxu0 0.0
    %1007 = vmatpush1.msra.mxu0 0.0
    %1008 = vmatprep.subr.mxu0 0.0
    %1009 = vmatpush1.msra.mxu0 0.0
    %1010 = vmatprep.subr.mxu0 0.0
    %1011 = vmatpush1.msra.mxu0 0.0
    %1012 = vmatprep.subr.mxu0 0.0
    %1013 = vmatpush1.msra.mxu0 0.0
    %1014 = vmatprep.subr.mxu0 0.0
    %1015 = vmatpush1.msra.mxu0 0.0
    %1016 = vmatprep.subr.mxu0 0.0
    %1017 = vmatpush1.msra.mxu0 0.0
    %1018 = vmatprep.subr.mxu0 0.0
    %1019 = vmatpush1.msra.mxu0 0.0
    %1020 = vmatprep.subr.mxu0 0.0
    %1021 = vmatpush1.msra.mxu0 0.0
    %1022 = vmatprep.subr.mxu0 0.0
    %1023 = vmatpush1.msra.mxu0 0.0
    %1024 = vmatprep.subr.mxu0 0.0
    %1025 = vmatpush1.msra.mxu0 0.0
    %1026 = vmatprep.subr.mxu0 0.0
    %1027 = vmatpush1.msra.mxu0 0.0
    %1028 = vmatprep.subr.mxu0 0.0
    %1029 = vmatpush1.msra.mxu0 0.0
    %1030 = vmatprep.subr.mxu0 0.0
    %1031 = vmatpush1.msra.mxu0 0.0
    %1032 = vmatprep.subr.mxu0 0.0
    %1033 = vmatpush1.msra.mxu0 0.0
    %1034 = vmatprep.subr.mxu0 0.0
    %1035 = vmatpush1.msra.mxu0 0.0
    %1036 = vmatprep.subr.mxu0 0.0
    %1037 = vmatpush1.msra.mxu0 0.0
    %1038 = vmatprep.mubr.f32.mxu0 0.0
    %1039 = vmatmul.mubr.f32.gmra.mrb[0].mxu0 %v969
    %v1040 = vpop.f32.mrb[0].mxu0
    %v1041 = vadd.f32 %v954, %v1040
    %v1042 = vpop.f32.mrb[0].mxu0
    %1043 = vmatprep.mubr.f32.mxu0 0.0
    %1044 = vmatmul.mubr.f32.gmra.mrb[0].mxu0 %v972
    %v1045 = vpop.f32.mrb[0].mxu0
    %v1046 = vadd.f32 %v959, %v1045
    %v1047 = vpop.f32.mrb[0].mxu0
    %1048 = vdwg.mxu0
    %v1049 = vadd.f32 %v14, %v1041
    %v1050 = vadd.f32 %v15, %v1046
    %v1051 = vsel %vm32, %v1049, 0.0
    %1052 = vadd.xlane.f32.xlu0 %v1051
    %v1053 = vpop.xlane.xlu0 %1052
    %v1054 = vsel %vm32, %v1050, 0.0
    %1055 = vadd.xlane.f32.xlu0 %v1054
    %v1056 = vpop.xlane.xlu0 %1055
    %v1057 = vmul.f32 %v1053, %v530
    %v1058 = vmul.f32 %v1056, %v530
    %v1059 = vsub.f32 %v1049, %v1057
    %v1060 = vsub.f32 %v1050, %v1058
    %v1061 = vmul.f32 %v1059, %v1059
    %v1062 = vmul.f32 %v1060, %v1060
    %v1063 = vsel %vm32, %v1061, 0.0
    %1064 = vadd.xlane.f32.xlu0 %v1063
    %v1065 = vpop.xlane.xlu0 %1064
    %v1066 = vsel %vm32, %v1062, 0.0
    %1067 = vadd.xlane.f32.xlu0 %v1066
    %v1068 = vpop.xlane.xlu0 %1067
    %v1069 = vmul.f32 %v1065, %v530
    %v1070 = vmul.f32 %v1068, %v530
    %v1071 = vadd.f32 %v1069, 1e-05
    %v1072 = vadd.f32 %v1070, 1e-05
    %v1073 = vrsqrt.pop %v1071
    %v1074 = vrsqrt.pop %v1072
    %v1075 = vmul.f32 %v1059, %v1073
    %v1076 = vmul.f32 %v1060, %v1074
    %v1077 = vlaneseq
    %v1078 = vshrl.u32 %v1077, 7
    %v1079 = vsub.s32 2, %v1078
    %v1080 = vrot.slane %v25, %v1079
    %v1081 = vmul.f32 %v1075, %v1080
    %v1082 = vmul.f32 %v1076, %v1080
    %v1083 = vlaneseq
    %v1084 = vshrl.u32 %v1083, 7
    %v1085 = vsub.s32 3, %v1084
    %v1086 = vrot.slane %v25, %v1085
    %v1087 = vadd.f32 %v1081, %v1086
    %v1088 = vadd.f32 %v1082, %v1086
    %v1090 = vsel %vm32, %v1087, 0
    %v1093 = vsel %vm32, %v1088, 0
    %1095 = vmatprep.subr.mxu0 0.0
    %1096 = vmatpush1.msra.mxu0 %v570
    %1097 = vmatprep.subr.mxu0 0.0
    %1098 = vmatpush1.msra.mxu0 0.0
    %1099 = vmatprep.subr.mxu0 0.0
    %1100 = vmatpush1.msra.mxu0 0.0
    %1101 = vmatprep.subr.mxu0 0.0
    %1102 = vmatpush1.msra.mxu0 0.0
    %1103 = vmatprep.subr.mxu0 0.0
    %1104 = vmatpush1.msra.mxu0 0.0
    %1105 = vmatprep.subr.mxu0 0.0
    %1106 = vmatpush1.msra.mxu0 0.0
    %1107 = vmatprep.subr.mxu0 0.0
    %1108 = vmatpush1.msra.mxu0 0.0
    %1109 = vmatprep.subr.mxu0 0.0
    %1110 = vmatpush1.msra.mxu0 0.0
    %1111 = vmatprep.subr.mxu0 0.0
    %1112 = vmatpush1.msra.mxu0 0.0
    %1113 = vmatprep.subr.mxu0 0.0
    %1114 = vmatpush1.msra.mxu0 0.0
    %1115 = vmatprep.subr.mxu0 0.0
    %1116 = vmatpush1.msra.mxu0 0.0
    %1117 = vmatprep.subr.mxu0 0.0
    %1118 = vmatpush1.msra.mxu0 0.0
    %1119 = vmatprep.subr.mxu0 0.0
    %1120 = vmatpush1.msra.mxu0 0.0
    %1121 = vmatprep.subr.mxu0 0.0
    %1122 = vmatpush1.msra.mxu0 0.0
    %1123 = vmatprep.subr.mxu0 0.0
    %1124 = vmatpush1.msra.mxu0 0.0
    %1125 = vmatprep.subr.mxu0 0.0
    %1126 = vmatpush1.msra.mxu0 0.0
    %1127 = vmatprep.subr.mxu0 0.0
    %1128 = vmatpush1.msra.mxu0 0.0
    %1129 = vmatprep.subr.mxu0 0.0
    %1130 = vmatpush1.msra.mxu0 0.0
    %1131 = vmatprep.subr.mxu0 0.0
    %1132 = vmatpush1.msra.mxu0 0.0
    %1133 = vmatprep.subr.mxu0 0.0
    %1134 = vmatpush1.msra.mxu0 0.0
    %1135 = vmatprep.subr.mxu0 0.0
    %1136 = vmatpush1.msra.mxu0 0.0
    %1137 = vmatprep.subr.mxu0 0.0
    %1138 = vmatpush1.msra.mxu0 0.0
    %1139 = vmatprep.subr.mxu0 0.0
    %1140 = vmatpush1.msra.mxu0 0.0
    %1141 = vmatprep.subr.mxu0 0.0
    %1142 = vmatpush1.msra.mxu0 0.0
    %1143 = vmatprep.subr.mxu0 0.0
    %1144 = vmatpush1.msra.mxu0 0.0
    %1145 = vmatprep.subr.mxu0 0.0
    %1146 = vmatpush1.msra.mxu0 0.0
    %1147 = vmatprep.subr.mxu0 0.0
    %1148 = vmatpush1.msra.mxu0 0.0
    %1149 = vmatprep.subr.mxu0 0.0
    %1150 = vmatpush1.msra.mxu0 0.0
    %1151 = vmatprep.subr.mxu0 0.0
    %1152 = vmatpush1.msra.mxu0 0.0
    %1153 = vmatprep.subr.mxu0 0.0
    %1154 = vmatpush1.msra.mxu0 0.0
    %1155 = vmatprep.subr.mxu0 0.0
    %1156 = vmatpush1.msra.mxu0 0.0
    %1157 = vmatprep.subr.mxu0 0.0
    %1158 = vmatpush1.msra.mxu0 0.0
    %1159 = vmatprep.mubr.f32.mxu0 0.0
    %1160 = vmatmul.mubr.f32.gmra.mrb[0].mxu0 %v1090
    %v1161 = vpop.f32.mrb[0].mxu0
    %v1162 = vadd.f32 0.0, %v1161
    %v1163 = vpop.f32.mrb[0].mxu0
    %1164 = vmatprep.mubr.f32.mxu0 0.0
    %1165 = vmatmul.mubr.f32.gmra.mrb[0].mxu0 %v1093
    %v1166 = vpop.f32.mrb[0].mxu0
    %v1167 = vadd.f32 0.0, %v1166
    %v1168 = vpop.f32.mrb[0].mxu0
    %1169 = vdwg.mxu0
    %1170 = vrot.lane.b32.xlu0 %v23, 122
    %v1171 = vpop.permute.xlu0 %1170
    %v1173 = vsel %vm32, %v561, 0
    %v1176 = vsel %vm32, %v562, 0
    %v1178 = vsel %vm39, %v1171, 0
    %1180 = vmatprep.subr.mxu0 0.0
    %1181 = vmatpush1.msra.mxu0 %v1178
    %1182 = vmatprep.subr.mxu0 0.0
    %1183 = vmatpush1.msra.mxu0 0.0
    %1184 = vmatprep.subr.mxu0 0.0
    %1185 = vmatpush1.msra.mxu0 0.0
    %1186 = vmatprep.subr.mxu0 0.0
    %1187 = vmatpush1.msra.mxu0 0.0
    %1188 = vmatprep.subr.mxu0 0.0
    %1189 = vmatpush1.msra.mxu0 0.0
    %1190 = vmatprep.subr.mxu0 0.0
    %1191 = vmatpush1.msra.mxu0 0.0
    %1192 = vmatprep.subr.mxu0 0.0
    %1193 = vmatpush1.msra.mxu0 0.0
    %1194 = vmatprep.subr.mxu0 0.0
    %1195 = vmatpush1.msra.mxu0 0.0
    %1196 = vmatprep.subr.mxu0 0.0
    %1197 = vmatpush1.msra.mxu0 0.0
    %1198 = vmatprep.subr.mxu0 0.0
    %1199 = vmatpush1.msra.mxu0 0.0
    %1200 = vmatprep.subr.mxu0 0.0
    %1201 = vmatpush1.msra.mxu0 0.0
    %1202 = vmatprep.subr.mxu0 0.0
    %1203 = vmatpush1.msra.mxu0 0.0
    %1204 = vmatprep.subr.mxu0 0.0
    %1205 = vmatpush1.msra.mxu0 0.0
    %1206 = vmatprep.subr.mxu0 0.0
    %1207 = vmatpush1.msra.mxu0 0.0
    %1208 = vmatprep.subr.mxu0 0.0
    %1209 = vmatpush1.msra.mxu0 0.0
    %1210 = vmatprep.subr.mxu0 0.0
    %1211 = vmatpush1.msra.mxu0 0.0
    %1212 = vmatprep.subr.mxu0 0.0
    %1213 = vmatpush1.msra.mxu0 0.0
    %1214 = vmatprep.subr.mxu0 0.0
    %1215 = vmatpush1.msra.mxu0 0.0
    %1216 = vmatprep.subr.mxu0 0.0
    %1217 = vmatpush1.msra.mxu0 0.0
    %1218 = vmatprep.subr.mxu0 0.0
    %1219 = vmatpush1.msra.mxu0 0.0
    %1220 = vmatprep.subr.mxu0 0.0
    %1221 = vmatpush1.msra.mxu0 0.0
    %1222 = vmatprep.subr.mxu0 0.0
    %1223 = vmatpush1.msra.mxu0 0.0
    %1224 = vmatprep.subr.mxu0 0.0
    %1225 = vmatpush1.msra.mxu0 0.0
    %1226 = vmatprep.subr.mxu0 0.0
    %1227 = vmatpush1.msra.mxu0 0.0
    %1228 = vmatprep.subr.mxu0 0.0
    %1229 = vmatpush1.msra.mxu0 0.0
    %1230 = vmatprep.subr.mxu0 0.0
    %1231 = vmatpush1.msra.mxu0 0.0
    %1232 = vmatprep.subr.mxu0 0.0
    %1233 = vmatpush1.msra.mxu0 0.0
    %1234 = vmatprep.subr.mxu0 0.0
    %1235 = vmatpush1.msra.mxu0 0.0
    %1236 = vmatprep.subr.mxu0 0.0
    %1237 = vmatpush1.msra.mxu0 0.0
    %1238 = vmatprep.subr.mxu0 0.0
    %1239 = vmatpush1.msra.mxu0 0.0
    %1240 = vmatprep.subr.mxu0 0.0
    %1241 = vmatpush1.msra.mxu0 0.0
    %1242 = vmatprep.subr.mxu0 0.0
    %1243 = vmatpush1.msra.mxu0 0.0
    %1244 = vmatprep.mubr.f32.mxu0 0.0
    %1245 = vmatmul.mubr.f32.gmra.mrb[0].mxu0 %v1173
    %v1246 = vpop.f32.mrb[0].mxu0
    %v1247 = vadd.f32 0.0, %v1246
    %v1248 = vpop.f32.mrb[0].mxu0
    %1249 = vmatprep.mubr.f32.mxu0 0.0
    %1250 = vmatmul.mubr.f32.gmra.mrb[0].mxu0 %v1176
    %v1251 = vpop.f32.mrb[0].mxu0
    %v1252 = vadd.f32 0.0, %v1251
    %v1253 = vpop.f32.mrb[0].mxu0
    %1254 = vdwg.mxu0
    %v1256 = vsel %vm124, %v1162, 0
    %v1259 = vsel %vm124, %v1167, 0
    %v1262 = vsel %vm124, %v1247, 0
    %v1265 = vsel %vm124, %v1252, 0
    %1267 = vmatprep.subr.mxu0 0.0
    %1268 = vmatpush1.xpose.msra.mxu0 %v1262
    %1269 = vmatprep.subr.mxu0 0.0
    %1270 = vmatpush1.xpose.msra.mxu0 %v1265
    %1271 = vmatprep.subr.mxu0 0.0
    %1272 = vmatpush1.xpose.msra.mxu0 0.0
    %1273 = vmatprep.subr.mxu0 0.0
    %1274 = vmatpush1.xpose.msra.mxu0 0.0
    %1275 = vmatprep.subr.mxu0 0.0
    %1276 = vmatpush1.xpose.msra.mxu0 0.0
    %1277 = vmatprep.subr.mxu0 0.0
    %1278 = vmatpush1.xpose.msra.mxu0 0.0
    %1279 = vmatprep.subr.mxu0 0.0
    %1280 = vmatpush1.xpose.msra.mxu0 0.0
    %1281 = vmatprep.subr.mxu0 0.0
    %1282 = vmatpush1.xpose.msra.mxu0 0.0
    %1283 = vmatprep.subr.mxu0 0.0
    %1284 = vmatpush1.xpose.msra.mxu0 0.0
    %1285 = vmatprep.subr.mxu0 0.0
    %1286 = vmatpush1.xpose.msra.mxu0 0.0
    %1287 = vmatprep.subr.mxu0 0.0
    %1288 = vmatpush1.xpose.msra.mxu0 0.0
    %1289 = vmatprep.subr.mxu0 0.0
    %1290 = vmatpush1.xpose.msra.mxu0 0.0
    %1291 = vmatprep.subr.mxu0 0.0
    %1292 = vmatpush1.xpose.msra.mxu0 0.0
    %1293 = vmatprep.subr.mxu0 0.0
    %1294 = vmatpush1.xpose.msra.mxu0 0.0
    %1295 = vmatprep.subr.mxu0 0.0
    %1296 = vmatpush1.xpose.msra.mxu0 0.0
    %1297 = vmatprep.subr.mxu0 0.0
    %1298 = vmatpush1.xpose.msra.mxu0 0.0
    %1299 = vmatprep.subr.mxu0 0.0
    %1300 = vmatpush1.xpose.msra.mxu0 0.0
    %1301 = vmatprep.subr.mxu0 0.0
    %1302 = vmatpush1.xpose.msra.mxu0 0.0
    %1303 = vmatprep.subr.mxu0 0.0
    %1304 = vmatpush1.xpose.msra.mxu0 0.0
    %1305 = vmatprep.subr.mxu0 0.0
    %1306 = vmatpush1.xpose.msra.mxu0 0.0
    %1307 = vmatprep.subr.mxu0 0.0
    %1308 = vmatpush1.xpose.msra.mxu0 0.0
    %1309 = vmatprep.subr.mxu0 0.0
    %1310 = vmatpush1.xpose.msra.mxu0 0.0
    %1311 = vmatprep.subr.mxu0 0.0
    %1312 = vmatpush1.xpose.msra.mxu0 0.0
    %1313 = vmatprep.subr.mxu0 0.0
    %1314 = vmatpush1.xpose.msra.mxu0 0.0
    %1315 = vmatprep.subr.mxu0 0.0
    %1316 = vmatpush1.xpose.msra.mxu0 0.0
    %1317 = vmatprep.subr.mxu0 0.0
    %1318 = vmatpush1.xpose.msra.mxu0 0.0
    %1319 = vmatprep.subr.mxu0 0.0
    %1320 = vmatpush1.xpose.msra.mxu0 0.0
    %1321 = vmatprep.subr.mxu0 0.0
    %1322 = vmatpush1.xpose.msra.mxu0 0.0
    %1323 = vmatprep.subr.mxu0 0.0
    %1324 = vmatpush1.xpose.msra.mxu0 0.0
    %1325 = vmatprep.subr.mxu0 0.0
    %1326 = vmatpush1.xpose.msra.mxu0 0.0
    %1327 = vmatprep.subr.mxu0 0.0
    %1328 = vmatpush1.xpose.msra.mxu0 0.0
    %1329 = vmatprep.subr.mxu0 0.0
    %1330 = vmatpush1.xpose.msra.mxu0 0.0
    %1331 = vmatprep.mubr.f32.mxu0 0.0
    %1332 = vmatmul.mubr.f32.gmra.mrb[0].mxu0 %v1256
    %v1333 = vpop.f32.mrb[0].mxu0
    %v1334 = vadd.f32 0.0, %v1333
    %v1335 = vpop.f32.mrb[0].mxu0
    %1336 = vmatprep.mubr.f32.mxu0 0.0
    %1337 = vmatmul.mubr.f32.gmra.mrb[0].mxu0 %v1259
    %v1338 = vpop.f32.mrb[0].mxu0
    %v1339 = vadd.f32 0.0, %v1338
    %v1340 = vpop.f32.mrb[0].mxu0
    %1341 = vdwg.mxu0
    %v1342 = vsel %vm30, -1e+09, %v1334
    %v1343 = vsel %vm31, -1e+09, %v1339
    %v1344 = vsel %vm210, %v1342, -inf
    %1345 = vmax.xlane.f32.xlu0 %v1344
    %v1346 = vpop.xlane.xlu0 %1345
    %v1347 = vsel %vm210, %v1343, -inf
    %1348 = vmax.xlane.f32.xlu0 %v1347
    %v1349 = vpop.xlane.xlu0 %1348
    %v1350 = vsub.f32 %v1342, %v1346
    %v1351 = vsub.f32 %v1343, %v1349
    %v1352 = vmul.f32 %v1350, 1.442695
    %v1353 = vpow.pop %v1352
    %v1354 = vmul.f32 %v1351, 1.442695
    %v1355 = vpow.pop %v1354
    %v1356 = vsel %vm210, %v1353, 0.0
    %1357 = vadd.xlane.f32.xlu0 %v1356
    %v1358 = vpop.xlane.xlu0 %1357
    %v1359 = vsel %vm210, %v1355, 0.0
    %1360 = vadd.xlane.f32.xlu0 %v1359
    %v1361 = vpop.xlane.xlu0 %1360
    %v1362 = vrcp.pop %v1358
    %v1363 = vrcp.pop %v1361
    %v1364 = vmul.f32 %v1353, %v1362
    %v1365 = vmul.f32 %v1355, %v1363
    %1366 = vrot.lane.b32.xlu0 %v1162, 125
    %v1367 = vpop.permute.xlu0 %1366
    %1368 = vrot.lane.b32.xlu0 %v1167, 125
    %v1369 = vpop.permute.xlu0 %1368
    %1370 = vrot.lane.b32.xlu0 %v1247, 125
    %v1371 = vpop.permute.xlu0 %1370
    %1372 = vrot.lane.b32.xlu0 %v1252, 125
    %v1373 = vpop.permute.xlu0 %1372
    %v1374 = vsel %vm124, %v1367, 0
    %v1376 = vsel %vm124, %v1369, 0
    %v1378 = vsel %vm124, %v1371, 0
    %v1380 = vsel %vm124, %v1373, 0
    %1382 = vmatprep.subr.mxu0 0.0
    %1383 = vmatpush1.xpose.msra.mxu0 %v1378
    %1384 = vmatprep.subr.mxu0 0.0
    %1385 = vmatpush1.xpose.msra.mxu0 %v1380
    %1386 = vmatprep.subr.mxu0 0.0
    %1387 = vmatpush1.xpose.msra.mxu0 0.0
    %1388 = vmatprep.subr.mxu0 0.0
    %1389 = vmatpush1.xpose.msra.mxu0 0.0
    %1390 = vmatprep.subr.mxu0 0.0
    %1391 = vmatpush1.xpose.msra.mxu0 0.0
    %1392 = vmatprep.subr.mxu0 0.0
    %1393 = vmatpush1.xpose.msra.mxu0 0.0
    %1394 = vmatprep.subr.mxu0 0.0
    %1395 = vmatpush1.xpose.msra.mxu0 0.0
    %1396 = vmatprep.subr.mxu0 0.0
    %1397 = vmatpush1.xpose.msra.mxu0 0.0
    %1398 = vmatprep.subr.mxu0 0.0
    %1399 = vmatpush1.xpose.msra.mxu0 0.0
    %1400 = vmatprep.subr.mxu0 0.0
    %1401 = vmatpush1.xpose.msra.mxu0 0.0
    %1402 = vmatprep.subr.mxu0 0.0
    %1403 = vmatpush1.xpose.msra.mxu0 0.0
    %1404 = vmatprep.subr.mxu0 0.0
    %1405 = vmatpush1.xpose.msra.mxu0 0.0
    %1406 = vmatprep.subr.mxu0 0.0
    %1407 = vmatpush1.xpose.msra.mxu0 0.0
    %1408 = vmatprep.subr.mxu0 0.0
    %1409 = vmatpush1.xpose.msra.mxu0 0.0
    %1410 = vmatprep.subr.mxu0 0.0
    %1411 = vmatpush1.xpose.msra.mxu0 0.0
    %1412 = vmatprep.subr.mxu0 0.0
    %1413 = vmatpush1.xpose.msra.mxu0 0.0
    %1414 = vmatprep.subr.mxu0 0.0
    %1415 = vmatpush1.xpose.msra.mxu0 0.0
    %1416 = vmatprep.subr.mxu0 0.0
    %1417 = vmatpush1.xpose.msra.mxu0 0.0
    %1418 = vmatprep.subr.mxu0 0.0
    %1419 = vmatpush1.xpose.msra.mxu0 0.0
    %1420 = vmatprep.subr.mxu0 0.0
    %1421 = vmatpush1.xpose.msra.mxu0 0.0
    %1422 = vmatprep.subr.mxu0 0.0
    %1423 = vmatpush1.xpose.msra.mxu0 0.0
    %1424 = vmatprep.subr.mxu0 0.0
    %1425 = vmatpush1.xpose.msra.mxu0 0.0
    %1426 = vmatprep.subr.mxu0 0.0
    %1427 = vmatpush1.xpose.msra.mxu0 0.0
    %1428 = vmatprep.subr.mxu0 0.0
    %1429 = vmatpush1.xpose.msra.mxu0 0.0
    %1430 = vmatprep.subr.mxu0 0.0
    %1431 = vmatpush1.xpose.msra.mxu0 0.0
    %1432 = vmatprep.subr.mxu0 0.0
    %1433 = vmatpush1.xpose.msra.mxu0 0.0
    %1434 = vmatprep.subr.mxu0 0.0
    %1435 = vmatpush1.xpose.msra.mxu0 0.0
    %1436 = vmatprep.subr.mxu0 0.0
    %1437 = vmatpush1.xpose.msra.mxu0 0.0
    %1438 = vmatprep.subr.mxu0 0.0
    %1439 = vmatpush1.xpose.msra.mxu0 0.0
    %1440 = vmatprep.subr.mxu0 0.0
    %1441 = vmatpush1.xpose.msra.mxu0 0.0
    %1442 = vmatprep.subr.mxu0 0.0
    %1443 = vmatpush1.xpose.msra.mxu0 0.0
    %1444 = vmatprep.subr.mxu0 0.0
    %1445 = vmatpush1.xpose.msra.mxu0 0.0
    %1446 = vmatprep.mubr.f32.mxu0 0.0
    %1447 = vmatmul.mubr.f32.gmra.mrb[0].mxu0 %v1374
    %v1448 = vpop.f32.mrb[0].mxu0
    %v1449 = vadd.f32 0.0, %v1448
    %v1450 = vpop.f32.mrb[0].mxu0
    %1451 = vmatprep.mubr.f32.mxu0 0.0
    %1452 = vmatmul.mubr.f32.gmra.mrb[0].mxu0 %v1376
    %v1453 = vpop.f32.mrb[0].mxu0
    %v1454 = vadd.f32 0.0, %v1453
    %v1455 = vpop.f32.mrb[0].mxu0
    %1456 = vdwg.mxu0
    %v1457 = vsel %vm30, -1e+09, %v1449
    %v1458 = vsel %vm31, -1e+09, %v1454
    %v1459 = vsel %vm210, %v1457, -inf
    %1460 = vmax.xlane.f32.xlu0 %v1459
    %v1461 = vpop.xlane.xlu0 %1460
    %v1462 = vsel %vm210, %v1458, -inf
    %1463 = vmax.xlane.f32.xlu0 %v1462
    %v1464 = vpop.xlane.xlu0 %1463
    %v1465 = vsub.f32 %v1457, %v1461
    %v1466 = vsub.f32 %v1458, %v1464
    %v1467 = vmul.f32 %v1465, 1.442695
    %v1468 = vpow.pop %v1467
    %v1469 = vmul.f32 %v1466, 1.442695
    %v1470 = vpow.pop %v1469
    %v1471 = vsel %vm210, %v1468, 0.0
    %1472 = vadd.xlane.f32.xlu0 %v1471
    %v1473 = vpop.xlane.xlu0 %1472
    %v1474 = vsel %vm210, %v1470, 0.0
    %1475 = vadd.xlane.f32.xlu0 %v1474
    %v1476 = vpop.xlane.xlu0 %1475
    %v1477 = vrcp.pop %v1473
    %v1478 = vrcp.pop %v1476
    %v1479 = vmul.f32 %v1468, %v1477
    %v1480 = vmul.f32 %v1470, %v1478
    %1481 = vrot.lane.b32.xlu0 %v1247, 116
    %v1482 = vpop.permute.xlu0 %1481
    %1483 = vrot.lane.b32.xlu0 %v1252, 116
    %v1484 = vpop.permute.xlu0 %1483
    %v1488 = vsel %vm210, %v1479, 0
    %v1491 = vsel %vm210, %v1480, 0
    %1493 = vmatprep.subr.mxu0 0.0
    %1494 = vmatpush1.msra.mxu0 %v1482
    %1495 = vmatprep.subr.mxu0 0.0
    %1496 = vmatpush1.msra.mxu0 %v1484
    %1497 = vmatprep.subr.mxu0 0.0
    %1498 = vmatpush1.msra.mxu0 0.0
    %1499 = vmatprep.subr.mxu0 0.0
    %1500 = vmatpush1.msra.mxu0 0.0
    %1501 = vmatprep.subr.mxu0 0.0
    %1502 = vmatpush1.msra.mxu0 0.0
    %1503 = vmatprep.subr.mxu0 0.0
    %1504 = vmatpush1.msra.mxu0 0.0
    %1505 = vmatprep.subr.mxu0 0.0
    %1506 = vmatpush1.msra.mxu0 0.0
    %1507 = vmatprep.subr.mxu0 0.0
    %1508 = vmatpush1.msra.mxu0 0.0
    %1509 = vmatprep.subr.mxu0 0.0
    %1510 = vmatpush1.msra.mxu0 0.0
    %1511 = vmatprep.subr.mxu0 0.0
    %1512 = vmatpush1.msra.mxu0 0.0
    %1513 = vmatprep.subr.mxu0 0.0
    %1514 = vmatpush1.msra.mxu0 0.0
    %1515 = vmatprep.subr.mxu0 0.0
    %1516 = vmatpush1.msra.mxu0 0.0
    %1517 = vmatprep.subr.mxu0 0.0
    %1518 = vmatpush1.msra.mxu0 0.0
    %1519 = vmatprep.subr.mxu0 0.0
    %1520 = vmatpush1.msra.mxu0 0.0
    %1521 = vmatprep.subr.mxu0 0.0
    %1522 = vmatpush1.msra.mxu0 0.0
    %1523 = vmatprep.subr.mxu0 0.0
    %1524 = vmatpush1.msra.mxu0 0.0
    %1525 = vmatprep.subr.mxu0 0.0
    %1526 = vmatpush1.msra.mxu0 0.0
    %1527 = vmatprep.subr.mxu0 0.0
    %1528 = vmatpush1.msra.mxu0 0.0
    %1529 = vmatprep.subr.mxu0 0.0
    %1530 = vmatpush1.msra.mxu0 0.0
    %1531 = vmatprep.subr.mxu0 0.0
    %1532 = vmatpush1.msra.mxu0 0.0
    %1533 = vmatprep.subr.mxu0 0.0
    %1534 = vmatpush1.msra.mxu0 0.0
    %1535 = vmatprep.subr.mxu0 0.0
    %1536 = vmatpush1.msra.mxu0 0.0
    %1537 = vmatprep.subr.mxu0 0.0
    %1538 = vmatpush1.msra.mxu0 0.0
    %1539 = vmatprep.subr.mxu0 0.0
    %1540 = vmatpush1.msra.mxu0 0.0
    %1541 = vmatprep.subr.mxu0 0.0
    %1542 = vmatpush1.msra.mxu0 0.0
    %1543 = vmatprep.subr.mxu0 0.0
    %1544 = vmatpush1.msra.mxu0 0.0
    %1545 = vmatprep.subr.mxu0 0.0
    %1546 = vmatpush1.msra.mxu0 0.0
    %1547 = vmatprep.subr.mxu0 0.0
    %1548 = vmatpush1.msra.mxu0 0.0
    %1549 = vmatprep.subr.mxu0 0.0
    %1550 = vmatpush1.msra.mxu0 0.0
    %1551 = vmatprep.subr.mxu0 0.0
    %1552 = vmatpush1.msra.mxu0 0.0
    %1553 = vmatprep.subr.mxu0 0.0
    %1554 = vmatpush1.msra.mxu0 0.0
    %1555 = vmatprep.subr.mxu0 0.0
    %1556 = vmatpush1.msra.mxu0 0.0
    %1557 = vmatprep.mubr.f32.mxu0 0.0
    %1558 = vmatmul.mubr.f32.gmra.mrb[0].mxu0 %v1488
    %v1559 = vpop.f32.mrb[0].mxu0
    %v1560 = vadd.f32 0.0, %v1559
    %v1561 = vpop.f32.mrb[0].mxu0
    %1562 = vmatprep.mubr.f32.mxu0 0.0
    %1563 = vmatmul.mubr.f32.gmra.mrb[0].mxu0 %v1491
    %v1564 = vpop.f32.mrb[0].mxu0
    %v1565 = vadd.f32 0.0, %v1564
    %v1566 = vpop.f32.mrb[0].mxu0
    %1567 = vdwg.mxu0
    %1568 = vrot.lane.b32.xlu0 %v1247, 122
    %v1569 = vpop.permute.xlu0 %1568
    %1570 = vrot.lane.b32.xlu0 %v1252, 122
    %v1571 = vpop.permute.xlu0 %1570
    %v1575 = vsel %vm210, %v1364, 0
    %v1578 = vsel %vm210, %v1365, 0
    %1580 = vmatprep.subr.mxu0 0.0
    %1581 = vmatpush1.msra.mxu0 %v1569
    %1582 = vmatprep.subr.mxu0 0.0
    %1583 = vmatpush1.msra.mxu0 %v1571
    %1584 = vmatprep.subr.mxu0 0.0
    %1585 = vmatpush1.msra.mxu0 0.0
    %1586 = vmatprep.subr.mxu0 0.0
    %1587 = vmatpush1.msra.mxu0 0.0
    %1588 = vmatprep.subr.mxu0 0.0
    %1589 = vmatpush1.msra.mxu0 0.0
    %1590 = vmatprep.subr.mxu0 0.0
    %1591 = vmatpush1.msra.mxu0 0.0
    %1592 = vmatprep.subr.mxu0 0.0
    %1593 = vmatpush1.msra.mxu0 0.0
    %1594 = vmatprep.subr.mxu0 0.0
    %1595 = vmatpush1.msra.mxu0 0.0
    %1596 = vmatprep.subr.mxu0 0.0
    %1597 = vmatpush1.msra.mxu0 0.0
    %1598 = vmatprep.subr.mxu0 0.0
    %1599 = vmatpush1.msra.mxu0 0.0
    %1600 = vmatprep.subr.mxu0 0.0
    %1601 = vmatpush1.msra.mxu0 0.0
    %1602 = vmatprep.subr.mxu0 0.0
    %1603 = vmatpush1.msra.mxu0 0.0
    %1604 = vmatprep.subr.mxu0 0.0
    %1605 = vmatpush1.msra.mxu0 0.0
    %1606 = vmatprep.subr.mxu0 0.0
    %1607 = vmatpush1.msra.mxu0 0.0
    %1608 = vmatprep.subr.mxu0 0.0
    %1609 = vmatpush1.msra.mxu0 0.0
    %1610 = vmatprep.subr.mxu0 0.0
    %1611 = vmatpush1.msra.mxu0 0.0
    %1612 = vmatprep.subr.mxu0 0.0
    %1613 = vmatpush1.msra.mxu0 0.0
    %1614 = vmatprep.subr.mxu0 0.0
    %1615 = vmatpush1.msra.mxu0 0.0
    %1616 = vmatprep.subr.mxu0 0.0
    %1617 = vmatpush1.msra.mxu0 0.0
    %1618 = vmatprep.subr.mxu0 0.0
    %1619 = vmatpush1.msra.mxu0 0.0
    %1620 = vmatprep.subr.mxu0 0.0
    %1621 = vmatpush1.msra.mxu0 0.0
    %1622 = vmatprep.subr.mxu0 0.0
    %1623 = vmatpush1.msra.mxu0 0.0
    %1624 = vmatprep.subr.mxu0 0.0
    %1625 = vmatpush1.msra.mxu0 0.0
    %1626 = vmatprep.subr.mxu0 0.0
    %1627 = vmatpush1.msra.mxu0 0.0
    %1628 = vmatprep.subr.mxu0 0.0
    %1629 = vmatpush1.msra.mxu0 0.0
    %1630 = vmatprep.subr.mxu0 0.0
    %1631 = vmatpush1.msra.mxu0 0.0
    %1632 = vmatprep.subr.mxu0 0.0
    %1633 = vmatpush1.msra.mxu0 0.0
    %1634 = vmatprep.subr.mxu0 0.0
    %1635 = vmatpush1.msra.mxu0 0.0
    %1636 = vmatprep.subr.mxu0 0.0
    %1637 = vmatpush1.msra.mxu0 0.0
    %1638 = vmatprep.subr.mxu0 0.0
    %1639 = vmatpush1.msra.mxu0 0.0
    %1640 = vmatprep.subr.mxu0 0.0
    %1641 = vmatpush1.msra.mxu0 0.0
    %1642 = vmatprep.subr.mxu0 0.0
    %1643 = vmatpush1.msra.mxu0 0.0
    %1644 = vmatprep.mubr.f32.mxu0 0.0
    %1645 = vmatmul.mubr.f32.gmra.mrb[0].mxu0 %v1575
    %v1646 = vpop.f32.mrb[0].mxu0
    %v1647 = vadd.f32 %v1560, %v1646
    %v1648 = vpop.f32.mrb[0].mxu0
    %1649 = vmatprep.mubr.f32.mxu0 0.0
    %1650 = vmatmul.mubr.f32.gmra.mrb[0].mxu0 %v1578
    %v1651 = vpop.f32.mrb[0].mxu0
    %v1652 = vadd.f32 %v1565, %v1651
    %v1653 = vpop.f32.mrb[0].mxu0
    %1654 = vdwg.mxu0
    %v1655 = vadd.f32 %v1087, %v1647
    %v1656 = vadd.f32 %v1088, %v1652
    %v1657 = vsel %vm32, %v1655, 0.0
    %1658 = vadd.xlane.f32.xlu0 %v1657
    %v1659 = vpop.xlane.xlu0 %1658
    %v1660 = vsel %vm32, %v1656, 0.0
    %1661 = vadd.xlane.f32.xlu0 %v1660
    %v1662 = vpop.xlane.xlu0 %1661
    %v1663 = vmul.f32 %v1659, %v530
    %v1664 = vmul.f32 %v1662, %v530
    %v1665 = vsub.f32 %v1655, %v1663
    %v1666 = vsub.f32 %v1656, %v1664
    %v1667 = vmul.f32 %v1665, %v1665
    %v1668 = vmul.f32 %v1666, %v1666
    %v1669 = vsel %vm32, %v1667, 0.0
    %1670 = vadd.xlane.f32.xlu0 %v1669
    %v1671 = vpop.xlane.xlu0 %1670
    %v1672 = vsel %vm32, %v1668, 0.0
    %1673 = vadd.xlane.f32.xlu0 %v1672
    %v1674 = vpop.xlane.xlu0 %1673
    %v1675 = vmul.f32 %v1671, %v530
    %v1676 = vmul.f32 %v1674, %v530
    %v1677 = vadd.f32 %v1675, 1e-05
    %v1678 = vadd.f32 %v1676, 1e-05
    %v1679 = vrsqrt.pop %v1677
    %v1680 = vrsqrt.pop %v1678
    %v1681 = vmul.f32 %v1665, %v1679
    %v1682 = vmul.f32 %v1666, %v1680
    %v1683 = vmul.f32 %v1681, %v1080
    %v1684 = vmul.f32 %v1682, %v1080
    %v1685 = vadd.f32 %v1683, %v1086
    %v1686 = vadd.f32 %v1684, %v1086
    %v1688 = vsel %vm32, %v1685, 0
    %v1691 = vsel %vm32, %v1686, 0
    %v1694 = vsel %vm39, %v24, 0
    %1696 = vmatprep.subr.mxu0 0.0
    %1697 = vmatpush1.msra.mxu0 %v1694
    %1698 = vmatprep.subr.mxu0 0.0
    %1699 = vmatpush1.msra.mxu0 0.0
    %1700 = vmatprep.subr.mxu0 0.0
    %1701 = vmatpush1.msra.mxu0 0.0
    %1702 = vmatprep.subr.mxu0 0.0
    %1703 = vmatpush1.msra.mxu0 0.0
    %1704 = vmatprep.subr.mxu0 0.0
    %1705 = vmatpush1.msra.mxu0 0.0
    %1706 = vmatprep.subr.mxu0 0.0
    %1707 = vmatpush1.msra.mxu0 0.0
    %1708 = vmatprep.subr.mxu0 0.0
    %1709 = vmatpush1.msra.mxu0 0.0
    %1710 = vmatprep.subr.mxu0 0.0
    %1711 = vmatpush1.msra.mxu0 0.0
    %1712 = vmatprep.subr.mxu0 0.0
    %1713 = vmatpush1.msra.mxu0 0.0
    %1714 = vmatprep.subr.mxu0 0.0
    %1715 = vmatpush1.msra.mxu0 0.0
    %1716 = vmatprep.subr.mxu0 0.0
    %1717 = vmatpush1.msra.mxu0 0.0
    %1718 = vmatprep.subr.mxu0 0.0
    %1719 = vmatpush1.msra.mxu0 0.0
    %1720 = vmatprep.subr.mxu0 0.0
    %1721 = vmatpush1.msra.mxu0 0.0
    %1722 = vmatprep.subr.mxu0 0.0
    %1723 = vmatpush1.msra.mxu0 0.0
    %1724 = vmatprep.subr.mxu0 0.0
    %1725 = vmatpush1.msra.mxu0 0.0
    %1726 = vmatprep.subr.mxu0 0.0
    %1727 = vmatpush1.msra.mxu0 0.0
    %1728 = vmatprep.subr.mxu0 0.0
    %1729 = vmatpush1.msra.mxu0 0.0
    %1730 = vmatprep.subr.mxu0 0.0
    %1731 = vmatpush1.msra.mxu0 0.0
    %1732 = vmatprep.subr.mxu0 0.0
    %1733 = vmatpush1.msra.mxu0 0.0
    %1734 = vmatprep.subr.mxu0 0.0
    %1735 = vmatpush1.msra.mxu0 0.0
    %1736 = vmatprep.subr.mxu0 0.0
    %1737 = vmatpush1.msra.mxu0 0.0
    %1738 = vmatprep.subr.mxu0 0.0
    %1739 = vmatpush1.msra.mxu0 0.0
    %1740 = vmatprep.subr.mxu0 0.0
    %1741 = vmatpush1.msra.mxu0 0.0
    %1742 = vmatprep.subr.mxu0 0.0
    %1743 = vmatpush1.msra.mxu0 0.0
    %1744 = vmatprep.subr.mxu0 0.0
    %1745 = vmatpush1.msra.mxu0 0.0
    %1746 = vmatprep.subr.mxu0 0.0
    %1747 = vmatpush1.msra.mxu0 0.0
    %1748 = vmatprep.subr.mxu0 0.0
    %1749 = vmatpush1.msra.mxu0 0.0
    %1750 = vmatprep.subr.mxu0 0.0
    %1751 = vmatpush1.msra.mxu0 0.0
    %1752 = vmatprep.subr.mxu0 0.0
    %1753 = vmatpush1.msra.mxu0 0.0
    %1754 = vmatprep.subr.mxu0 0.0
    %1755 = vmatpush1.msra.mxu0 0.0
    %1756 = vmatprep.subr.mxu0 0.0
    %1757 = vmatpush1.msra.mxu0 0.0
    %1758 = vmatprep.subr.mxu0 0.0
    %1759 = vmatpush1.msra.mxu0 0.0
    %1760 = vmatprep.mubr.f32.mxu0 0.0
    %1761 = vmatmul.mubr.f32.gmra.mrb[0].mxu0 %v1688
    %v1762 = vpop.f32.mrb[0].mxu0
    %v1763 = vadd.f32 0.0, %v1762
    %v1764 = vpop.f32.mrb[0].mxu0
    %1765 = vmatprep.mubr.f32.mxu0 0.0
    %1766 = vmatmul.mubr.f32.gmra.mrb[0].mxu0 %v1691
    %v1767 = vpop.f32.mrb[0].mxu0
    %v1768 = vadd.f32 0.0, %v1767
    %v1769 = vpop.f32.mrb[0].mxu0
    %1770 = vdwg.mxu0
    %1771 = vst [vmem:[#allocation2] sm:$0xff] %v1763
    %1772 = vst [vmem:[#allocation2 + $0x8] sm:$0xff] %v1768
    // Predicated region
    $region10: #{transformer_forward.1} parent=1 // pred_check
      _
    $region11: #{transformer_forward.1} parent=1 // pred_check_branch
      %1774 = sbr.rel (0) target = $region13
    $region12: #{transformer_forward.1} parent=1 // pred_region
      %s1776 = ssub.s32 256, 256
      %1777 = vsyncadd [#allocation3], %s1776
      %s1778 = sshll.u32 [#allocation2], 4
      %s1779 = int_to_ptr.vmem [resolvable:$true] %s1778
      %1784 = dma.vmem_to_hbm [thread:$0]  %s1779, 256, %s2, [#allocation3], 128, 128, 8
    $region13: #{transformer_forward.1} parent=1 // pred_fallthru
      _
    // Predicated region
    $region14: #{transformer_forward.1} parent=1 // pred_check
      _
    $region15: #{transformer_forward.1} parent=1 // pred_check_branch
      %1786 = sbr.rel (0) target = $region17
    $region16: #{transformer_forward.1} parent=1 // pred_region
      %1787 = dma.done [#allocation3], 256
    $region17: #{transformer_forward.1} parent=1 // pred_fallthru
      _
    %1788 = vsyncpa [#allocation3], 1

</llo_original>
